<compile_context>
chip_gen: v5e
topology: v5e:2x2
jax: 0.10.0
libtpu: 0.0.40
codegen_flags: <defaults>
</compile_context>

<pallas_src>
import jax
import jax.numpy as jnp
from jax.experimental import pallas as pl
from jax.experimental.pallas import tpu as pltpu

INPUT_SIZE = 32 * 32      # 1024
NUM_CLASSES = 10
N_PAD = 128               # lane-dense padded output width
TM_CAP = 2048             # row-tile cap (~20 MiB live VMEM incl. double buffers)
VMEM_LIMIT_BYTES = 40 * 1024 * 1024   # keeps TM_CAP legal on v5e's 16 MiB default


def _linear_kernel(x_ref, w_ref, b_ref, o_ref):
    # x_ref: (TM, 1024)  w_ref: (1024, 128)  b_ref: (1, 128)  o_ref: (TM, 128)
    acc = jnp.dot(
        x_ref[...], w_ref[...],
        preferred_element_type=jnp.float32,
        precision=jax.lax.Precision.HIGHEST,
    )
    o_ref[...] = (acc + b_ref[...]).astype(o_ref.dtype)


def _round_up(x, m):
    return ((x + m - 1) // m) * m


def prepare_params(weight, bias):
    """One-time param prep: pad nn.Linear (10,1024)/(10,) to lane-dense
    (1024, 128) / (1, 128) so the kernel's output stores are full 128-lane
    vst's. Call once at init; do NOT rebuild per forward."""
    w_pad = jnp.zeros((INPUT_SIZE, N_PAD), jnp.float32).at[:, :NUM_CLASSES].set(
        weight.T.astype(jnp.float32))
    b_pad = jnp.zeros((1, N_PAD), jnp.float32).at[:, :NUM_CLASSES].set(
        bias.astype(jnp.float32))
    return w_pad, b_pad


def cifar_model_forward(xb, w_pad, b_pad):
    """CIFARModel.forward: xb.reshape(-1, 1024) @ W.T + b.

    xb:    (..., 32, 32) float32 (e.g. NCHW images)
    w_pad: (1024, 128) from prepare_params
    b_pad: (1, 128)    from prepare_params
    returns (M, 10) float32, M = number of flattened rows.
    """
    x2d = xb.reshape(-1, INPUT_SIZE)                    # (M, 1024)
    M = x2d.shape[0]

    # Row tile: multiple of 8, capped at TM_CAP, and sized so the parallel
    # grid axis has >=2 steps whenever M permits (v7x has 2 TensorCores).
    tm = min(TM_CAP, _round_up(pl.cdiv(M, 2), 8))
    grid = (pl.cdiv(M, tm),)   # trailing partial block handled by Pallas masking

    cost = pl.CostEstimate(
        flops=2 * M * INPUT_SIZE * N_PAD,
        transcendentals=0,
        bytes_accessed=(M * INPUT_SIZE * 4
                        + INPUT_SIZE * N_PAD * 4
                        + M * N_PAD * 4),
    )

    out = pl.pallas_call(
        _linear_kernel,
        out_shape=jax.ShapeDtypeStruct((M, N_PAD), jnp.float32),
        grid_spec=pltpu.PrefetchScalarGridSpec(
            num_scalar_prefetch=0,
            grid=grid,
            in_specs=[
                pl.BlockSpec((tm, INPUT_SIZE), lambda i: (i, 0)),   # streamed rows
                pl.BlockSpec((INPUT_SIZE, N_PAD), lambda i: (0, 0)),  # resident W
                pl.BlockSpec((1, N_PAD), lambda i: (0, 0)),           # resident b
            ],
            out_specs=pl.BlockSpec((tm, N_PAD), lambda i: (i, 0)),
        ),
        compiler_params=pltpu.CompilerParams(
            dimension_semantics=("parallel",),
            vmem_limit_bytes=VMEM_LIMIT_BYTES,
        ),
        cost_estimate=cost,
    )(x2d, w_pad, b_pad)

    return out[:, :NUM_CLASSES]


def init_params(key):
    """Deterministic nn.Linear-style init: U(-1/sqrt(fan_in), 1/sqrt(fan_in))."""
    kw, kb = jax.random.split(key)
    bound = 1.0 / jnp.sqrt(jnp.float32(INPUT_SIZE))
    weight = jax.random.uniform(
        kw, (NUM_CLASSES, INPUT_SIZE), jnp.float32, minval=-bound, maxval=bound)
    bias = jax.random.uniform(
        kb, (NUM_CLASSES,), jnp.float32, minval=-bound, maxval=bound)
    return weight, bias


def _reference(xb, weight, bias):
    x2d = xb.reshape(-1, INPUT_SIZE)
    return jnp.dot(x2d, weight.T, precision=jax.lax.Precision.HIGHEST) + bias


if __name__ == "__main__":
    key = jax.random.PRNGKey(0)
    k_x, k_x2, k_p = jax.random.split(key, 3)

    weight, bias = init_params(k_p)
    w_pad, b_pad = prepare_params(weight, bias)   # hoisted out of the forward path

    # Case 1: small CIFAR-like NCHW batch (2, 3, 32, 32) -> 6 rows (non-8-aligned).
    x = jax.random.normal(k_x, (2, 3, 32, 32), dtype=jnp.float32)
    out = jax.block_until_ready(cifar_model_forward(x, w_pad, b_pad))
    ref = _reference(x, weight, bias)
    assert out.shape == (6, NUM_CLASSES)
    assert jnp.allclose(out, ref, atol=1e-4, rtol=1e-4)

    # Case 2: 200 images -> 2 grid steps with a masked trailing partial block.
    x2 = jax.random.normal(k_x2, (200, 32, 32), dtype=jnp.float32)
    out2 = jax.block_until_ready(cifar_model_forward(x2, w_pad, b_pad))
    ref2 = _reference(x2, weight, bias)
    assert out2.shape == (200, NUM_CLASSES)
    assert jnp.allclose(out2, ref2, atol=1e-4, rtol=1e-4)

    print("KERNEL_OK")
</pallas_src>

<mosaic_0001>
module attributes {stable_mosaic.version = 11 : i64} {
  func.func @_linear_kernel(%arg0: i32, %arg1: memref<8x1024xf32, #tpu.memory_space<vmem>>, %arg2: memref<1024x128xf32, #tpu.memory_space<vmem>>, %arg3: memref<1x128xf32, #tpu.memory_space<vmem>>, %arg4: memref<8x128xf32, #tpu.memory_space<vmem>>) attributes {dimension_semantics = [#tpu.dimension_semantics<parallel>], iteration_bounds = array<i64: 1>, scalar_prefetch = 0 : i64, scratch_operands = 0 : i64, tpu.core_type = #tpu.core_type<tc>, window_params = [{transform_indices = @transform_0, window_bounds = array<i64: 8, 1024>}, {pipeline_mode = #tpu.pipeline_mode<synchronous>, transform_indices = @transform_1, window_bounds = array<i64: 1024, 128>}, {pipeline_mode = #tpu.pipeline_mode<synchronous>, transform_indices = @transform_2, window_bounds = array<i64: 1, 128>}, {transform_indices = @transform_3, window_bounds = array<i64: 8, 128>}]} {
    %c0 = arith.constant 0 : index
    %c0_0 = arith.constant 0 : index
    %0 = vector.load %arg1[%c0, %c0_0] : memref<8x1024xf32, #tpu.memory_space<vmem>>, vector<8x1024xf32>
    %c0_1 = arith.constant 0 : index
    %c0_2 = arith.constant 0 : index
    %1 = vector.load %arg2[%c0_1, %c0_2] : memref<1024x128xf32, #tpu.memory_space<vmem>>, vector<1024x128xf32>
    %cst = arith.constant dense<0.000000e+00> : vector<8x128xf32>
    %2 = tpu.matmul %0, %1, %cst {dimension_numbers = #tpu.dot_dimension_numbers<[1], [0], [0], [1], [0, 0, 1, 1], [], []>, precision = #tpu.contract_precision<fp32>} : vector<8x1024xf32>, vector<1024x128xf32>, vector<8x128xf32> -> vector<8x128xf32>
    %c0_3 = arith.constant 0 : index
    %c0_4 = arith.constant 0 : index
    %3 = vector.load %arg3[%c0_3, %c0_4] : memref<1x128xf32, #tpu.memory_space<vmem>>, vector<1x128xf32>
    %4 = vector.broadcast %3 : vector<1x128xf32> to vector<8x128xf32>
    %5 = arith.addf %2, %4 : vector<8x128xf32>
    %c0_5 = arith.constant 0 : index
    %c0_6 = arith.constant 0 : index
    %6 = vector.load %arg4[%c0_5, %c0_6] : memref<8x128xf32, #tpu.memory_space<vmem>>, vector<8x128xf32>
    tpu.vector_store %arg4[%c0_5, %c0_6], %5 {strides = array<i32>} : memref<8x128xf32, #tpu.memory_space<vmem>>, vector<8x128xf32>,
    return
  }
  func.func @transform_0(%arg0: i32) -> (i32, i32) {
    %c0_i32 = arith.constant 0 : i32
    %c0_i32_0 = arith.constant 0 : i32
    return %arg0, %c0_i32 : i32, i32
  }
  func.func @transform_1(%arg0: i32) -> (i32, i32) {
    %c0_i32 = arith.constant 0 : i32
    %c0_i32_0 = arith.constant 0 : i32
    %c0_i32_1 = arith.constant 0 : i32
    return %c0_i32, %c0_i32_0 : i32, i32
  }
  func.func @transform_2(%arg0: i32) -> (i32, i32) {
    %c0_i32 = arith.constant 0 : i32
    %c0_i32_0 = arith.constant 0 : i32
    %c0_i32_1 = arith.constant 0 : i32
    return %c0_i32, %c0_i32_0 : i32, i32
  }
  func.func @transform_3(%arg0: i32) -> (i32, i32) {
    %c0_i32 = arith.constant 0 : i32
    %c0_i32_0 = arith.constant 0 : i32
    return %arg0, %c0_i32 : i32, i32
  }
}

</mosaic_0001>

<llo_original>
// kernel: tpu_custom_call.1
$region0: #{tpu_custom_call.1}
  #allocation0 [shape = 'u32[]', space=smem, size = 0x4, offset = 0x4, fixed_abs, tag = 'smem constant byte address 0x4 - core index']
  #allocation1 [shape = 'u32[72,128]{1,0:T(1,128)}', space=vmem, size = 0x9000, scoped, tag = 'internal scratch']
  %s0 = inlined_call_operand.hbm [shape: f32[6,1024], index: 0, kind: input, shape index: {}]
  %s1 = inlined_call_operand.hbm [shape: f32[1024,128], index: 1, kind: input, shape index: {}]
  %s2 = inlined_call_operand.vmem [shape: f32[1,128], index: 2, kind: input, shape index: {}]
  %s3 = inlined_call_operand.hbm [shape: f32[6,128], index: 3, kind: output, shape index: {}]
  %s4 = sld [smem:[#allocation0]]
  $region30: #{tpu_custom_call.1} parent=0
    _
  %s6 = ssub.s32 1, %s4
  %s7 = scalar_select 0, %s6, %s4
  $region1: #{tpu_custom_call.1} parent=0
    #allocation2 [shape = 'u8[32768]{0}', space=vmem, size = 0x8000, scoped, tag = 'input window, operand 0, single buffered']
    #allocation3 [shape = 's32[1]{0}', space=sflag, size = 0x4, scoped, tag = 'scoped memory for tpu_custom_call.1']
    #allocation4 [shape = 's32[1]{0}', space=sflag, size = 0x4, scoped, tag = 'scoped memory for tpu_custom_call.1']
    #allocation5 [shape = 'u8[524288]{0}', space=vmem, size = 0x80000, scoped, tag = 'input window, operand 1, single buffered']
    #allocation6 [shape = 's32[1]{0}', space=sflag, size = 0x4, scoped, tag = 'scoped memory for tpu_custom_call.1']
    #allocation7 [shape = 'u8[4096]{0}', space=vmem, size = 0x1000, scoped, tag = 'output window, operand 0, single buffered']
    %8 = vsyncpa [#allocation3], 0
    %9 = vsyncpa [#allocation6], 0
    %10 = vsyncpa [#allocation4], 0
    // Predicated region
    $region2: #{tpu_custom_call.1} parent=1 // pred_check
      _
    $region3: #{tpu_custom_call.1} parent=1 // pred_check_branch
      %12 = sbr.rel (0) target = $region5
    $region4: #{tpu_custom_call.1} parent=1 // pred_region
      %14 = vsyncadd [#allocation3], 0
      %s16 = sshll.u32 %s0, 4
      %s17 = int_to_ptr.hbm [resolvable:$true] %s16
      %s18 = sshll.u32 [#allocation2], 4
      %s19 = int_to_ptr.vmem [resolvable:$true] %s18
      %21 = dma.hbm_to_vmem [thread:$0]  %s17, 1024, %s19, [#allocation3]
    $region5: #{tpu_custom_call.1} parent=1 // pred_fallthru
      _
    // Predicated region
    $region6: #{tpu_custom_call.1} parent=1 // pred_check
      _
    $region7: #{tpu_custom_call.1} parent=1 // pred_check_branch
      %23 = sbr.rel (0) target = $region9
    $region8: #{tpu_custom_call.1} parent=1 // pred_region
      %25 = vsyncadd [#allocation6], 0
      %s26 = sshll.u32 %s1, 4
      %s27 = int_to_ptr.hbm [resolvable:$true] %s26
      %s28 = sshll.u32 [#allocation5], 4
      %s29 = int_to_ptr.vmem [resolvable:$true] %s28
      %34 = dma.hbm_to_vmem [thread:$0]  %s27, 16384, %s29, [#allocation6], 128, 128, 8
    $region9: #{tpu_custom_call.1} parent=1 // pred_fallthru
      _
    // Predicated region
    $region10: #{tpu_custom_call.1} parent=1 // pred_check
      _
    $region11: #{tpu_custom_call.1} parent=1 // pred_check_branch
      %36 = sbr.rel (0) target = $region13
    $region12: #{tpu_custom_call.1} parent=1 // pred_region
      _
    $region13: #{tpu_custom_call.1} parent=1 // pred_fallthru
      _
    // Predicated region
    $region14: #{tpu_custom_call.1} parent=1 // pred_check
      _
    $region15: #{tpu_custom_call.1} parent=1 // pred_check_branch
      %38 = sbr.rel (0) target = $region17
    $region16: #{tpu_custom_call.1} parent=1 // pred_region
      %40 = dma.done [#allocation3], 1024
    $region17: #{tpu_custom_call.1} parent=1 // pred_fallthru
      _
    // Predicated region
    $region18: #{tpu_custom_call.1} parent=1 // pred_check
      _
    $region19: #{tpu_custom_call.1} parent=1 // pred_check_branch
      %42 = sbr.rel (0) target = $region21
    $region20: #{tpu_custom_call.1} parent=1 // pred_region
      %44 = dma.done [#allocation6], 16384
    $region21: #{tpu_custom_call.1} parent=1 // pred_fallthru
      _
    %v45 = vld [vmem:[#allocation2] sm:$0xff]
    %v46 = vld [vmem:[#allocation2 + $0x8] sm:$0xff]
    %v47 = vld [vmem:[#allocation2 + $0x10] sm:$0xff]
    %v48 = vld [vmem:[#allocation2 + $0x18] sm:$0xff]
    %v49 = vld [vmem:[#allocation2 + $0x20] sm:$0xff]
    %v50 = vld [vmem:[#allocation2 + $0x28] sm:$0xff]
    %v51 = vld [vmem:[#allocation2 + $0x30] sm:$0xff]
    %v52 = vld [vmem:[#allocation2 + $0x38] sm:$0xff]
    %v53 = vld [vmem:[#allocation5] sm:$0xff]
    %v54 = vld [vmem:[#allocation5 + $0x8] sm:$0xff]
    %v55 = vld [vmem:[#allocation5 + $0x10] sm:$0xff]
    %v56 = vld [vmem:[#allocation5 + $0x18] sm:$0xff]
    %v57 = vld [vmem:[#allocation5 + $0x20] sm:$0xff]
    %v58 = vld [vmem:[#allocation5 + $0x28] sm:$0xff]
    %v59 = vld [vmem:[#allocation5 + $0x30] sm:$0xff]
    %v60 = vld [vmem:[#allocation5 + $0x38] sm:$0xff]
    %v61 = vld [vmem:[#allocation5 + $0x40] sm:$0xff]
    %v62 = vld [vmem:[#allocation5 + $0x48] sm:$0xff]
    %v63 = vld [vmem:[#allocation5 + $0x50] sm:$0xff]
    %v64 = vld [vmem:[#allocation5 + $0x58] sm:$0xff]
    %v65 = vld [vmem:[#allocation5 + $0x60] sm:$0xff]
    %v66 = vld [vmem:[#allocation5 + $0x68] sm:$0xff]
    %v67 = vld [vmem:[#allocation5 + $0x70] sm:$0xff]
    %v68 = vld [vmem:[#allocation5 + $0x78] sm:$0xff]
    %v69 = vld [vmem:[#allocation5 + $0x80] sm:$0xff]
    %v70 = vld [vmem:[#allocation5 + $0x88] sm:$0xff]
    %v71 = vld [vmem:[#allocation5 + $0x90] sm:$0xff]
    %v72 = vld [vmem:[#allocation5 + $0x98] sm:$0xff]
    %v73 = vld [vmem:[#allocation5 + $0xa0] sm:$0xff]
    %v74 = vld [vmem:[#allocation5 + $0xa8] sm:$0xff]
    %v75 = vld [vmem:[#allocation5 + $0xb0] sm:$0xff]
    %v76 = vld [vmem:[#allocation5 + $0xb8] sm:$0xff]
    %v77 = vld [vmem:[#allocation5 + $0xc0] sm:$0xff]
    %v78 = vld [vmem:[#allocation5 + $0xc8] sm:$0xff]
    %v79 = vld [vmem:[#allocation5 + $0xd0] sm:$0xff]
    %v80 = vld [vmem:[#allocation5 + $0xd8] sm:$0xff]
    %v81 = vld [vmem:[#allocation5 + $0xe0] sm:$0xff]
    %v82 = vld [vmem:[#allocation5 + $0xe8] sm:$0xff]
    %v83 = vld [vmem:[#allocation5 + $0xf0] sm:$0xff]
    %v84 = vld [vmem:[#allocation5 + $0xf8] sm:$0xff]
    %v85 = vld [vmem:[#allocation5 + $0x100] sm:$0xff]
    %v86 = vld [vmem:[#allocation5 + $0x108] sm:$0xff]
    %v87 = vld [vmem:[#allocation5 + $0x110] sm:$0xff]
    %v88 = vld [vmem:[#allocation5 + $0x118] sm:$0xff]
    %v89 = vld [vmem:[#allocation5 + $0x120] sm:$0xff]
    %v90 = vld [vmem:[#allocation5 + $0x128] sm:$0xff]
    %v91 = vld [vmem:[#allocation5 + $0x130] sm:$0xff]
    %v92 = vld [vmem:[#allocation5 + $0x138] sm:$0xff]
    %v93 = vld [vmem:[#allocation5 + $0x140] sm:$0xff]
    %v94 = vld [vmem:[#allocation5 + $0x148] sm:$0xff]
    %v95 = vld [vmem:[#allocation5 + $0x150] sm:$0xff]
    %v96 = vld [vmem:[#allocation5 + $0x158] sm:$0xff]
    %v97 = vld [vmem:[#allocation5 + $0x160] sm:$0xff]
    %v98 = vld [vmem:[#allocation5 + $0x168] sm:$0xff]
    %v99 = vld [vmem:[#allocation5 + $0x170] sm:$0xff]
    %v100 = vld [vmem:[#allocation5 + $0x178] sm:$0xff]
    %v101 = vld [vmem:[#allocation5 + $0x180] sm:$0xff]
    %v102 = vld [vmem:[#allocation5 + $0x188] sm:$0xff]
    %v103 = vld [vmem:[#allocation5 + $0x190] sm:$0xff]
    %v104 = vld [vmem:[#allocation5 + $0x198] sm:$0xff]
    %v105 = vld [vmem:[#allocation5 + $0x1a0] sm:$0xff]
    %v106 = vld [vmem:[#allocation5 + $0x1a8] sm:$0xff]
    %v107 = vld [vmem:[#allocation5 + $0x1b0] sm:$0xff]
    %v108 = vld [vmem:[#allocation5 + $0x1b8] sm:$0xff]
    %v109 = vld [vmem:[#allocation5 + $0x1c0] sm:$0xff]
    %v110 = vld [vmem:[#allocation5 + $0x1c8] sm:$0xff]
    %v111 = vld [vmem:[#allocation5 + $0x1d0] sm:$0xff]
    %v112 = vld [vmem:[#allocation5 + $0x1d8] sm:$0xff]
    %v113 = vld [vmem:[#allocation5 + $0x1e0] sm:$0xff]
    %v114 = vld [vmem:[#allocation5 + $0x1e8] sm:$0xff]
    %v115 = vld [vmem:[#allocation5 + $0x1f0] sm:$0xff]
    %v116 = vld [vmem:[#allocation5 + $0x1f8] sm:$0xff]
    %v117 = vld [vmem:[#allocation5 + $0x200] sm:$0xff]
    %v118 = vld [vmem:[#allocation5 + $0x208] sm:$0xff]
    %v119 = vld [vmem:[#allocation5 + $0x210] sm:$0xff]
    %v120 = vld [vmem:[#allocation5 + $0x218] sm:$0xff]
    %v121 = vld [vmem:[#allocation5 + $0x220] sm:$0xff]
    %v122 = vld [vmem:[#allocation5 + $0x228] sm:$0xff]
    %v123 = vld [vmem:[#allocation5 + $0x230] sm:$0xff]
    %v124 = vld [vmem:[#allocation5 + $0x238] sm:$0xff]
    %v125 = vld [vmem:[#allocation5 + $0x240] sm:$0xff]
    %v126 = vld [vmem:[#allocation5 + $0x248] sm:$0xff]
    %v127 = vld [vmem:[#allocation5 + $0x250] sm:$0xff]
    %v128 = vld [vmem:[#allocation5 + $0x258] sm:$0xff]
    %v129 = vld [vmem:[#allocation5 + $0x260] sm:$0xff]
    %v130 = vld [vmem:[#allocation5 + $0x268] sm:$0xff]
    %v131 = vld [vmem:[#allocation5 + $0x270] sm:$0xff]
    %v132 = vld [vmem:[#allocation5 + $0x278] sm:$0xff]
    %v133 = vld [vmem:[#allocation5 + $0x280] sm:$0xff]
    %v134 = vld [vmem:[#allocation5 + $0x288] sm:$0xff]
    %v135 = vld [vmem:[#allocation5 + $0x290] sm:$0xff]
    %v136 = vld [vmem:[#allocation5 + $0x298] sm:$0xff]
    %v137 = vld [vmem:[#allocation5 + $0x2a0] sm:$0xff]
    %v138 = vld [vmem:[#allocation5 + $0x2a8] sm:$0xff]
    %v139 = vld [vmem:[#allocation5 + $0x2b0] sm:$0xff]
    %v140 = vld [vmem:[#allocation5 + $0x2b8] sm:$0xff]
    %v141 = vld [vmem:[#allocation5 + $0x2c0] sm:$0xff]
    %v142 = vld [vmem:[#allocation5 + $0x2c8] sm:$0xff]
    %v143 = vld [vmem:[#allocation5 + $0x2d0] sm:$0xff]
    %v144 = vld [vmem:[#allocation5 + $0x2d8] sm:$0xff]
    %v145 = vld [vmem:[#allocation5 + $0x2e0] sm:$0xff]
    %v146 = vld [vmem:[#allocation5 + $0x2e8] sm:$0xff]
    %v147 = vld [vmem:[#allocation5 + $0x2f0] sm:$0xff]
    %v148 = vld [vmem:[#allocation5 + $0x2f8] sm:$0xff]
    %v149 = vld [vmem:[#allocation5 + $0x300] sm:$0xff]
    %v150 = vld [vmem:[#allocation5 + $0x308] sm:$0xff]
    %v151 = vld [vmem:[#allocation5 + $0x310] sm:$0xff]
    %v152 = vld [vmem:[#allocation5 + $0x318] sm:$0xff]
    %v153 = vld [vmem:[#allocation5 + $0x320] sm:$0xff]
    %v154 = vld [vmem:[#allocation5 + $0x328] sm:$0xff]
    %v155 = vld [vmem:[#allocation5 + $0x330] sm:$0xff]
    %v156 = vld [vmem:[#allocation5 + $0x338] sm:$0xff]
    %v157 = vld [vmem:[#allocation5 + $0x340] sm:$0xff]
    %v158 = vld [vmem:[#allocation5 + $0x348] sm:$0xff]
    %v159 = vld [vmem:[#allocation5 + $0x350] sm:$0xff]
    %v160 = vld [vmem:[#allocation5 + $0x358] sm:$0xff]
    %v161 = vld [vmem:[#allocation5 + $0x360] sm:$0xff]
    %v162 = vld [vmem:[#allocation5 + $0x368] sm:$0xff]
    %v163 = vld [vmem:[#allocation5 + $0x370] sm:$0xff]
    %v164 = vld [vmem:[#allocation5 + $0x378] sm:$0xff]
    %v165 = vld [vmem:[#allocation5 + $0x380] sm:$0xff]
    %v166 = vld [vmem:[#allocation5 + $0x388] sm:$0xff]
    %v167 = vld [vmem:[#allocation5 + $0x390] sm:$0xff]
    %v168 = vld [vmem:[#allocation5 + $0x398] sm:$0xff]
    %v169 = vld [vmem:[#allocation5 + $0x3a0] sm:$0xff]
    %v170 = vld [vmem:[#allocation5 + $0x3a8] sm:$0xff]
    %v171 = vld [vmem:[#allocation5 + $0x3b0] sm:$0xff]
    %v172 = vld [vmem:[#allocation5 + $0x3b8] sm:$0xff]
    %v173 = vld [vmem:[#allocation5 + $0x3c0] sm:$0xff]
    %v174 = vld [vmem:[#allocation5 + $0x3c8] sm:$0xff]
    %v175 = vld [vmem:[#allocation5 + $0x3d0] sm:$0xff]
    %v176 = vld [vmem:[#allocation5 + $0x3d8] sm:$0xff]
    %v177 = vld [vmem:[#allocation5 + $0x3e0] sm:$0xff]
    %v178 = vld [vmem:[#allocation5 + $0x3e8] sm:$0xff]
    %v179 = vld [vmem:[#allocation5 + $0x3f0] sm:$0xff]
    %v180 = vld [vmem:[#allocation5 + $0x3f8] sm:$0xff]
    %v181 = vld [vmem:[%s2] sm:$0x1]
    %v183 = vperm.slane %v181, 0
    %v185 = vand.u32 %v68, 4294901760
    %186 = vmatpush.msra.mxu0 %v185
    %v187 = vand.u32 %v67, 4294901760
    %188 = vmatpush.msra.mxu0 %v187
    %v189 = vand.u32 %v66, 4294901760
    %190 = vmatpush.msra.mxu0 %v189
    %v191 = vand.u32 %v65, 4294901760
    %192 = vmatpush.msra.mxu0 %v191
    %v193 = vand.u32 %v64, 4294901760
    %194 = vmatpush.msra.mxu0 %v193
    %v195 = vand.u32 %v63, 4294901760
    %196 = vmatpush.msra.mxu0 %v195
    %v197 = vand.u32 %v62, 4294901760
    %198 = vmatpush.msra.mxu0 %v197
    %v199 = vand.u32 %v61, 4294901760
    %200 = vmatpush.msra.mxu0 %v199
    %v201 = vand.u32 %v60, 4294901760
    %202 = vmatpush.msra.mxu0 %v201
    %v203 = vand.u32 %v59, 4294901760
    %204 = vmatpush.msra.mxu0 %v203
    %v205 = vand.u32 %v58, 4294901760
    %206 = vmatpush.msra.mxu0 %v205
    %v207 = vand.u32 %v57, 4294901760
    %208 = vmatpush.msra.mxu0 %v207
    %v209 = vand.u32 %v56, 4294901760
    %210 = vmatpush.msra.mxu0 %v209
    %v211 = vand.u32 %v55, 4294901760
    %212 = vmatpush.msra.mxu0 %v211
    %v213 = vand.u32 %v54, 4294901760
    %214 = vmatpush.msra.mxu0 %v213
    %v215 = vand.u32 %v53, 4294901760
    %216 = vmatpush.msra.mxu0 %v215
    %v217 = vand.u32 %v45, 4294901760
    %v218 = vsub.f32 %v45, %v217
    %v219 = vand.u32 %v218, 4294901760
    %v220 = vsub.f32 %v218, %v219
    %v221 = vand.u32 %v220, 4294901760
    %222 = vmatmul.f32.gmra.mxu0 %v221
    %v223 = vpop.f32.mrf.mxu0
    %v224 = vadd.f32 %v183, %v223
    %225 = vdwg.mxu0
    %v226 = vand.u32 %v68, 4294901760
    %v227 = vsub.f32 %v68, %v226
    %v228 = vand.u32 %v227, 4294901760
    %v229 = vsub.f32 %v227, %v228
    %v230 = vand.u32 %v229, 4294901760
    %231 = vmatpush.msra.mxu0 %v230
    %v232 = vand.u32 %v67, 4294901760
    %v233 = vsub.f32 %v67, %v232
    %v234 = vand.u32 %v233, 4294901760
    %v235 = vsub.f32 %v233, %v234
    %v236 = vand.u32 %v235, 4294901760
    %237 = vmatpush.msra.mxu0 %v236
    %v238 = vand.u32 %v66, 4294901760
    %v239 = vsub.f32 %v66, %v238
    %v240 = vand.u32 %v239, 4294901760
    %v241 = vsub.f32 %v239, %v240
    %v242 = vand.u32 %v241, 4294901760
    %243 = vmatpush.msra.mxu0 %v242
    %v244 = vand.u32 %v65, 4294901760
    %v245 = vsub.f32 %v65, %v244
    %v246 = vand.u32 %v245, 4294901760
    %v247 = vsub.f32 %v245, %v246
    %v248 = vand.u32 %v247, 4294901760
    %249 = vmatpush.msra.mxu0 %v248
    %v250 = vand.u32 %v64, 4294901760
    %v251 = vsub.f32 %v64, %v250
    %v252 = vand.u32 %v251, 4294901760
    %v253 = vsub.f32 %v251, %v252
    %v254 = vand.u32 %v253, 4294901760
    %255 = vmatpush.msra.mxu0 %v254
    %v256 = vand.u32 %v63, 4294901760
    %v257 = vsub.f32 %v63, %v256
    %v258 = vand.u32 %v257, 4294901760
    %v259 = vsub.f32 %v257, %v258
    %v260 = vand.u32 %v259, 4294901760
    %261 = vmatpush.msra.mxu0 %v260
    %v262 = vand.u32 %v62, 4294901760
    %v263 = vsub.f32 %v62, %v262
    %v264 = vand.u32 %v263, 4294901760
    %v265 = vsub.f32 %v263, %v264
    %v266 = vand.u32 %v265, 4294901760
    %267 = vmatpush.msra.mxu0 %v266
    %v268 = vand.u32 %v61, 4294901760
    %v269 = vsub.f32 %v61, %v268
    %v270 = vand.u32 %v269, 4294901760
    %v271 = vsub.f32 %v269, %v270
    %v272 = vand.u32 %v271, 4294901760
    %273 = vmatpush.msra.mxu0 %v272
    %v274 = vand.u32 %v60, 4294901760
    %v275 = vsub.f32 %v60, %v274
    %v276 = vand.u32 %v275, 4294901760
    %v277 = vsub.f32 %v275, %v276
    %v278 = vand.u32 %v277, 4294901760
    %279 = vmatpush.msra.mxu0 %v278
    %v280 = vand.u32 %v59, 4294901760
    %v281 = vsub.f32 %v59, %v280
    %v282 = vand.u32 %v281, 4294901760
    %v283 = vsub.f32 %v281, %v282
    %v284 = vand.u32 %v283, 4294901760
    %285 = vmatpush.msra.mxu0 %v284
    %v286 = vand.u32 %v58, 4294901760
    %v287 = vsub.f32 %v58, %v286
    %v288 = vand.u32 %v287, 4294901760
    %v289 = vsub.f32 %v287, %v288
    %v290 = vand.u32 %v289, 4294901760
    %291 = vmatpush.msra.mxu0 %v290
    %v292 = vand.u32 %v57, 4294901760
    %v293 = vsub.f32 %v57, %v292
    %v294 = vand.u32 %v293, 4294901760
    %v295 = vsub.f32 %v293, %v294
    %v296 = vand.u32 %v295, 4294901760
    %297 = vmatpush.msra.mxu0 %v296
    %v298 = vand.u32 %v56, 4294901760
    %v299 = vsub.f32 %v56, %v298
    %v300 = vand.u32 %v299, 4294901760
    %v301 = vsub.f32 %v299, %v300
    %v302 = vand.u32 %v301, 4294901760
    %303 = vmatpush.msra.mxu0 %v302
    %v304 = vand.u32 %v55, 4294901760
    %v305 = vsub.f32 %v55, %v304
    %v306 = vand.u32 %v305, 4294901760
    %v307 = vsub.f32 %v305, %v306
    %v308 = vand.u32 %v307, 4294901760
    %309 = vmatpush.msra.mxu0 %v308
    %v310 = vand.u32 %v54, 4294901760
    %v311 = vsub.f32 %v54, %v310
    %v312 = vand.u32 %v311, 4294901760
    %v313 = vsub.f32 %v311, %v312
    %v314 = vand.u32 %v313, 4294901760
    %315 = vmatpush.msra.mxu0 %v314
    %v316 = vand.u32 %v53, 4294901760
    %v317 = vsub.f32 %v53, %v316
    %v318 = vand.u32 %v317, 4294901760
    %v319 = vsub.f32 %v317, %v318
    %v320 = vand.u32 %v319, 4294901760
    %321 = vmatpush.msra.mxu0 %v320
    %v322 = vand.u32 %v45, 4294901760
    %323 = vmatmul.f32.gmra.mxu0 %v322
    %v324 = vpop.f32.mrf.mxu0
    %v325 = vadd.f32 %v224, %v324
    %326 = vdwg.mxu0
    %v327 = vand.u32 %v68, 4294901760
    %v328 = vsub.f32 %v68, %v327
    %329 = vmatpush.msra.mxu0 %v328
    %v330 = vand.u32 %v67, 4294901760
    %v331 = vsub.f32 %v67, %v330
    %332 = vmatpush.msra.mxu0 %v331
    %v333 = vand.u32 %v66, 4294901760
    %v334 = vsub.f32 %v66, %v333
    %335 = vmatpush.msra.mxu0 %v334
    %v336 = vand.u32 %v65, 4294901760
    %v337 = vsub.f32 %v65, %v336
    %338 = vmatpush.msra.mxu0 %v337
    %v339 = vand.u32 %v64, 4294901760
    %v340 = vsub.f32 %v64, %v339
    %341 = vmatpush.msra.mxu0 %v340
    %v342 = vand.u32 %v63, 4294901760
    %v343 = vsub.f32 %v63, %v342
    %344 = vmatpush.msra.mxu0 %v343
    %v345 = vand.u32 %v62, 4294901760
    %v346 = vsub.f32 %v62, %v345
    %347 = vmatpush.msra.mxu0 %v346
    %v348 = vand.u32 %v61, 4294901760
    %v349 = vsub.f32 %v61, %v348
    %350 = vmatpush.msra.mxu0 %v349
    %v351 = vand.u32 %v60, 4294901760
    %v352 = vsub.f32 %v60, %v351
    %353 = vmatpush.msra.mxu0 %v352
    %v354 = vand.u32 %v59, 4294901760
    %v355 = vsub.f32 %v59, %v354
    %356 = vmatpush.msra.mxu0 %v355
    %v357 = vand.u32 %v58, 4294901760
    %v358 = vsub.f32 %v58, %v357
    %359 = vmatpush.msra.mxu0 %v358
    %v360 = vand.u32 %v57, 4294901760
    %v361 = vsub.f32 %v57, %v360
    %362 = vmatpush.msra.mxu0 %v361
    %v363 = vand.u32 %v56, 4294901760
    %v364 = vsub.f32 %v56, %v363
    %365 = vmatpush.msra.mxu0 %v364
    %v366 = vand.u32 %v55, 4294901760
    %v367 = vsub.f32 %v55, %v366
    %368 = vmatpush.msra.mxu0 %v367
    %v369 = vand.u32 %v54, 4294901760
    %v370 = vsub.f32 %v54, %v369
    %371 = vmatpush.msra.mxu0 %v370
    %v372 = vand.u32 %v53, 4294901760
    %v373 = vsub.f32 %v53, %v372
    %374 = vmatpush.msra.mxu0 %v373
    %v375 = vand.u32 %v45, 4294901760
    %v376 = vsub.f32 %v45, %v375
    %377 = vmatmul.f32.gmra.mxu0 %v376
    %v378 = vpop.f32.mrf.mxu0
    %v379 = vadd.f32 %v325, %v378
    %380 = vdwg.mxu0
    %v381 = vand.u32 %v68, 4294901760
    %382 = vmatpush.msra.mxu0 %v381
    %v383 = vand.u32 %v67, 4294901760
    %384 = vmatpush.msra.mxu0 %v383
    %v385 = vand.u32 %v66, 4294901760
    %386 = vmatpush.msra.mxu0 %v385
    %v387 = vand.u32 %v65, 4294901760
    %388 = vmatpush.msra.mxu0 %v387
    %v389 = vand.u32 %v64, 4294901760
    %390 = vmatpush.msra.mxu0 %v389
    %v391 = vand.u32 %v63, 4294901760
    %392 = vmatpush.msra.mxu0 %v391
    %v393 = vand.u32 %v62, 4294901760
    %394 = vmatpush.msra.mxu0 %v393
    %v395 = vand.u32 %v61, 4294901760
    %396 = vmatpush.msra.mxu0 %v395
    %v397 = vand.u32 %v60, 4294901760
    %398 = vmatpush.msra.mxu0 %v397
    %v399 = vand.u32 %v59, 4294901760
    %400 = vmatpush.msra.mxu0 %v399
    %v401 = vand.u32 %v58, 4294901760
    %402 = vmatpush.msra.mxu0 %v401
    %v403 = vand.u32 %v57, 4294901760
    %404 = vmatpush.msra.mxu0 %v403
    %v405 = vand.u32 %v56, 4294901760
    %406 = vmatpush.msra.mxu0 %v405
    %v407 = vand.u32 %v55, 4294901760
    %408 = vmatpush.msra.mxu0 %v407
    %v409 = vand.u32 %v54, 4294901760
    %410 = vmatpush.msra.mxu0 %v409
    %v411 = vand.u32 %v53, 4294901760
    %412 = vmatpush.msra.mxu0 %v411
    %v413 = vand.u32 %v45, 4294901760
    %v414 = vsub.f32 %v45, %v413
    %v415 = vand.u32 %v414, 4294901760
    %416 = vmatmul.f32.gmra.mxu0 %v415
    %v417 = vpop.f32.mrf.mxu0
    %v418 = vadd.f32 %v379, %v417
    %419 = vdwg.mxu0
    %v420 = vand.u32 %v68, 4294901760
    %v421 = vsub.f32 %v68, %v420
    %v422 = vand.u32 %v421, 4294901760
    %423 = vmatpush.msra.mxu0 %v422
    %v424 = vand.u32 %v67, 4294901760
    %v425 = vsub.f32 %v67, %v424
    %v426 = vand.u32 %v425, 4294901760
    %427 = vmatpush.msra.mxu0 %v426
    %v428 = vand.u32 %v66, 4294901760
    %v429 = vsub.f32 %v66, %v428
    %v430 = vand.u32 %v429, 4294901760
    %431 = vmatpush.msra.mxu0 %v430
    %v432 = vand.u32 %v65, 4294901760
    %v433 = vsub.f32 %v65, %v432
    %v434 = vand.u32 %v433, 4294901760
    %435 = vmatpush.msra.mxu0 %v434
    %v436 = vand.u32 %v64, 4294901760
    %v437 = vsub.f32 %v64, %v436
    %v438 = vand.u32 %v437, 4294901760
    %439 = vmatpush.msra.mxu0 %v438
    %v440 = vand.u32 %v63, 4294901760
    %v441 = vsub.f32 %v63, %v440
    %v442 = vand.u32 %v441, 4294901760
    %443 = vmatpush.msra.mxu0 %v442
    %v444 = vand.u32 %v62, 4294901760
    %v445 = vsub.f32 %v62, %v444
    %v446 = vand.u32 %v445, 4294901760
    %447 = vmatpush.msra.mxu0 %v446
    %v448 = vand.u32 %v61, 4294901760
    %v449 = vsub.f32 %v61, %v448
    %v450 = vand.u32 %v449, 4294901760
    %451 = vmatpush.msra.mxu0 %v450
    %v452 = vand.u32 %v60, 4294901760
    %v453 = vsub.f32 %v60, %v452
    %v454 = vand.u32 %v453, 4294901760
    %455 = vmatpush.msra.mxu0 %v454
    %v456 = vand.u32 %v59, 4294901760
    %v457 = vsub.f32 %v59, %v456
    %v458 = vand.u32 %v457, 4294901760
    %459 = vmatpush.msra.mxu0 %v458
    %v460 = vand.u32 %v58, 4294901760
    %v461 = vsub.f32 %v58, %v460
    %v462 = vand.u32 %v461, 4294901760
    %463 = vmatpush.msra.mxu0 %v462
    %v464 = vand.u32 %v57, 4294901760
    %v465 = vsub.f32 %v57, %v464
    %v466 = vand.u32 %v465, 4294901760
    %467 = vmatpush.msra.mxu0 %v466
    %v468 = vand.u32 %v56, 4294901760
    %v469 = vsub.f32 %v56, %v468
    %v470 = vand.u32 %v469, 4294901760
    %471 = vmatpush.msra.mxu0 %v470
    %v472 = vand.u32 %v55, 4294901760
    %v473 = vsub.f32 %v55, %v472
    %v474 = vand.u32 %v473, 4294901760
    %475 = vmatpush.msra.mxu0 %v474
    %v476 = vand.u32 %v54, 4294901760
    %v477 = vsub.f32 %v54, %v476
    %v478 = vand.u32 %v477, 4294901760
    %479 = vmatpush.msra.mxu0 %v478
    %v480 = vand.u32 %v53, 4294901760
    %v481 = vsub.f32 %v53, %v480
    %v482 = vand.u32 %v481, 4294901760
    %483 = vmatpush.msra.mxu0 %v482
    %v484 = vand.u32 %v45, 4294901760
    %485 = vmatmul.f32.gmra.mxu0 %v484
    %v486 = vpop.f32.mrf.mxu0
    %v487 = vadd.f32 %v418, %v486
    %488 = vdwg.mxu0
    %v489 = vand.u32 %v68, 4294901760
    %490 = vmatpush.msra.mxu0 %v489
    %v491 = vand.u32 %v67, 4294901760
    %492 = vmatpush.msra.mxu0 %v491
    %v493 = vand.u32 %v66, 4294901760
    %494 = vmatpush.msra.mxu0 %v493
    %v495 = vand.u32 %v65, 4294901760
    %496 = vmatpush.msra.mxu0 %v495
    %v497 = vand.u32 %v64, 4294901760
    %498 = vmatpush.msra.mxu0 %v497
    %v499 = vand.u32 %v63, 4294901760
    %500 = vmatpush.msra.mxu0 %v499
    %v501 = vand.u32 %v62, 4294901760
    %502 = vmatpush.msra.mxu0 %v501
    %v503 = vand.u32 %v61, 4294901760
    %504 = vmatpush.msra.mxu0 %v503
    %v505 = vand.u32 %v60, 4294901760
    %506 = vmatpush.msra.mxu0 %v505
    %v507 = vand.u32 %v59, 4294901760
    %508 = vmatpush.msra.mxu0 %v507
    %v509 = vand.u32 %v58, 4294901760
    %510 = vmatpush.msra.mxu0 %v509
    %v511 = vand.u32 %v57, 4294901760
    %512 = vmatpush.msra.mxu0 %v511
    %v513 = vand.u32 %v56, 4294901760
    %514 = vmatpush.msra.mxu0 %v513
    %v515 = vand.u32 %v55, 4294901760
    %516 = vmatpush.msra.mxu0 %v515
    %v517 = vand.u32 %v54, 4294901760
    %518 = vmatpush.msra.mxu0 %v517
    %v519 = vand.u32 %v53, 4294901760
    %520 = vmatpush.msra.mxu0 %v519
    %v521 = vand.u32 %v45, 4294901760
    %522 = vmatmul.f32.gmra.mxu0 %v521
    %v523 = vpop.f32.mrf.mxu0
    %v524 = vadd.f32 %v487, %v523
    %525 = vdwg.mxu0
    %v526 = vand.u32 %v84, 4294901760
    %527 = vmatpush.msra.mxu0 %v526
    %v528 = vand.u32 %v83, 4294901760
    %529 = vmatpush.msra.mxu0 %v528
    %v530 = vand.u32 %v82, 4294901760
    %531 = vmatpush.msra.mxu0 %v530
    %v532 = vand.u32 %v81, 4294901760
    %533 = vmatpush.msra.mxu0 %v532
    %v534 = vand.u32 %v80, 4294901760
    %535 = vmatpush.msra.mxu0 %v534
    %v536 = vand.u32 %v79, 4294901760
    %537 = vmatpush.msra.mxu0 %v536
    %v538 = vand.u32 %v78, 4294901760
    %539 = vmatpush.msra.mxu0 %v538
    %v540 = vand.u32 %v77, 4294901760
    %541 = vmatpush.msra.mxu0 %v540
    %v542 = vand.u32 %v76, 4294901760
    %543 = vmatpush.msra.mxu0 %v542
    %v544 = vand.u32 %v75, 4294901760
    %545 = vmatpush.msra.mxu0 %v544
    %v546 = vand.u32 %v74, 4294901760
    %547 = vmatpush.msra.mxu0 %v546
    %v548 = vand.u32 %v73, 4294901760
    %549 = vmatpush.msra.mxu0 %v548
    %v550 = vand.u32 %v72, 4294901760
    %551 = vmatpush.msra.mxu0 %v550
    %v552 = vand.u32 %v71, 4294901760
    %553 = vmatpush.msra.mxu0 %v552
    %v554 = vand.u32 %v70, 4294901760
    %555 = vmatpush.msra.mxu0 %v554
    %v556 = vand.u32 %v69, 4294901760
    %557 = vmatpush.msra.mxu0 %v556
    %v558 = vand.u32 %v46, 4294901760
    %v559 = vsub.f32 %v46, %v558
    %v560 = vand.u32 %v559, 4294901760
    %v561 = vsub.f32 %v559, %v560
    %v562 = vand.u32 %v561, 4294901760
    %563 = vmatmul.f32.gmra.mxu0 %v562
    %v564 = vpop.f32.mrf.mxu0
    %v565 = vadd.f32 %v524, %v564
    %566 = vdwg.mxu0
    %v567 = vand.u32 %v84, 4294901760
    %v568 = vsub.f32 %v84, %v567
    %v569 = vand.u32 %v568, 4294901760
    %v570 = vsub.f32 %v568, %v569
    %v571 = vand.u32 %v570, 4294901760
    %572 = vmatpush.msra.mxu0 %v571
    %v573 = vand.u32 %v83, 4294901760
    %v574 = vsub.f32 %v83, %v573
    %v575 = vand.u32 %v574, 4294901760
    %v576 = vsub.f32 %v574, %v575
    %v577 = vand.u32 %v576, 4294901760
    %578 = vmatpush.msra.mxu0 %v577
    %v579 = vand.u32 %v82, 4294901760
    %v580 = vsub.f32 %v82, %v579
    %v581 = vand.u32 %v580, 4294901760
    %v582 = vsub.f32 %v580, %v581
    %v583 = vand.u32 %v582, 4294901760
    %584 = vmatpush.msra.mxu0 %v583
    %v585 = vand.u32 %v81, 4294901760
    %v586 = vsub.f32 %v81, %v585
    %v587 = vand.u32 %v586, 4294901760
    %v588 = vsub.f32 %v586, %v587
    %v589 = vand.u32 %v588, 4294901760
    %590 = vmatpush.msra.mxu0 %v589
    %v591 = vand.u32 %v80, 4294901760
    %v592 = vsub.f32 %v80, %v591
    %v593 = vand.u32 %v592, 4294901760
    %v594 = vsub.f32 %v592, %v593
    %v595 = vand.u32 %v594, 4294901760
    %596 = vmatpush.msra.mxu0 %v595
    %v597 = vand.u32 %v79, 4294901760
    %v598 = vsub.f32 %v79, %v597
    %v599 = vand.u32 %v598, 4294901760
    %v600 = vsub.f32 %v598, %v599
    %v601 = vand.u32 %v600, 4294901760
    %602 = vmatpush.msra.mxu0 %v601
    %v603 = vand.u32 %v78, 4294901760
    %v604 = vsub.f32 %v78, %v603
    %v605 = vand.u32 %v604, 4294901760
    %v606 = vsub.f32 %v604, %v605
    %v607 = vand.u32 %v606, 4294901760
    %608 = vmatpush.msra.mxu0 %v607
    %v609 = vand.u32 %v77, 4294901760
    %v610 = vsub.f32 %v77, %v609
    %v611 = vand.u32 %v610, 4294901760
    %v612 = vsub.f32 %v610, %v611
    %v613 = vand.u32 %v612, 4294901760
    %614 = vmatpush.msra.mxu0 %v613
    %v615 = vand.u32 %v76, 4294901760
    %v616 = vsub.f32 %v76, %v615
    %v617 = vand.u32 %v616, 4294901760
    %v618 = vsub.f32 %v616, %v617
    %v619 = vand.u32 %v618, 4294901760
    %620 = vmatpush.msra.mxu0 %v619
    %v621 = vand.u32 %v75, 4294901760
    %v622 = vsub.f32 %v75, %v621
    %v623 = vand.u32 %v622, 4294901760
    %v624 = vsub.f32 %v622, %v623
    %v625 = vand.u32 %v624, 4294901760
    %626 = vmatpush.msra.mxu0 %v625
    %v627 = vand.u32 %v74, 4294901760
    %v628 = vsub.f32 %v74, %v627
    %v629 = vand.u32 %v628, 4294901760
    %v630 = vsub.f32 %v628, %v629
    %v631 = vand.u32 %v630, 4294901760
    %632 = vmatpush.msra.mxu0 %v631
    %v633 = vand.u32 %v73, 4294901760
    %v634 = vsub.f32 %v73, %v633
    %v635 = vand.u32 %v634, 4294901760
    %v636 = vsub.f32 %v634, %v635
    %v637 = vand.u32 %v636, 4294901760
    %638 = vmatpush.msra.mxu0 %v637
    %v639 = vand.u32 %v72, 4294901760
    %v640 = vsub.f32 %v72, %v639
    %v641 = vand.u32 %v640, 4294901760
    %v642 = vsub.f32 %v640, %v641
    %v643 = vand.u32 %v642, 4294901760
    %644 = vmatpush.msra.mxu0 %v643
    %v645 = vand.u32 %v71, 4294901760
    %v646 = vsub.f32 %v71, %v645
    %v647 = vand.u32 %v646, 4294901760
    %v648 = vsub.f32 %v646, %v647
    %v649 = vand.u32 %v648, 4294901760
    %650 = vmatpush.msra.mxu0 %v649
    %v651 = vand.u32 %v70, 4294901760
    %v652 = vsub.f32 %v70, %v651
    %v653 = vand.u32 %v652, 4294901760
    %v654 = vsub.f32 %v652, %v653
    %v655 = vand.u32 %v654, 4294901760
    %656 = vmatpush.msra.mxu0 %v655
    %v657 = vand.u32 %v69, 4294901760
    %v658 = vsub.f32 %v69, %v657
    %v659 = vand.u32 %v658, 4294901760
    %v660 = vsub.f32 %v658, %v659
    %v661 = vand.u32 %v660, 4294901760
    %662 = vmatpush.msra.mxu0 %v661
    %v663 = vand.u32 %v46, 4294901760
    %664 = vmatmul.f32.gmra.mxu0 %v663
    %v665 = vpop.f32.mrf.mxu0
    %v666 = vadd.f32 %v565, %v665
    %667 = vdwg.mxu0
    %v668 = vand.u32 %v84, 4294901760
    %v669 = vsub.f32 %v84, %v668
    %670 = vmatpush.msra.mxu0 %v669
    %v671 = vand.u32 %v83, 4294901760
    %v672 = vsub.f32 %v83, %v671
    %673 = vmatpush.msra.mxu0 %v672
    %v674 = vand.u32 %v82, 4294901760
    %v675 = vsub.f32 %v82, %v674
    %676 = vmatpush.msra.mxu0 %v675
    %v677 = vand.u32 %v81, 4294901760
    %v678 = vsub.f32 %v81, %v677
    %679 = vmatpush.msra.mxu0 %v678
    %v680 = vand.u32 %v80, 4294901760
    %v681 = vsub.f32 %v80, %v680
    %682 = vmatpush.msra.mxu0 %v681
    %v683 = vand.u32 %v79, 4294901760
    %v684 = vsub.f32 %v79, %v683
    %685 = vmatpush.msra.mxu0 %v684
    %v686 = vand.u32 %v78, 4294901760
    %v687 = vsub.f32 %v78, %v686
    %688 = vmatpush.msra.mxu0 %v687
    %v689 = vand.u32 %v77, 4294901760
    %v690 = vsub.f32 %v77, %v689
    %691 = vmatpush.msra.mxu0 %v690
    %v692 = vand.u32 %v76, 4294901760
    %v693 = vsub.f32 %v76, %v692
    %694 = vmatpush.msra.mxu0 %v693
    %v695 = vand.u32 %v75, 4294901760
    %v696 = vsub.f32 %v75, %v695
    %697 = vmatpush.msra.mxu0 %v696
    %v698 = vand.u32 %v74, 4294901760
    %v699 = vsub.f32 %v74, %v698
    %700 = vmatpush.msra.mxu0 %v699
    %v701 = vand.u32 %v73, 4294901760
    %v702 = vsub.f32 %v73, %v701
    %703 = vmatpush.msra.mxu0 %v702
    %v704 = vand.u32 %v72, 4294901760
    %v705 = vsub.f32 %v72, %v704
    %706 = vmatpush.msra.mxu0 %v705
    %v707 = vand.u32 %v71, 4294901760
    %v708 = vsub.f32 %v71, %v707
    %709 = vmatpush.msra.mxu0 %v708
    %v710 = vand.u32 %v70, 4294901760
    %v711 = vsub.f32 %v70, %v710
    %712 = vmatpush.msra.mxu0 %v711
    %v713 = vand.u32 %v69, 4294901760
    %v714 = vsub.f32 %v69, %v713
    %715 = vmatpush.msra.mxu0 %v714
    %v716 = vand.u32 %v46, 4294901760
    %v717 = vsub.f32 %v46, %v716
    %718 = vmatmul.f32.gmra.mxu0 %v717
    %v719 = vpop.f32.mrf.mxu0
    %v720 = vadd.f32 %v666, %v719
    %721 = vdwg.mxu0
    %v722 = vand.u32 %v84, 4294901760
    %723 = vmatpush.msra.mxu0 %v722
    %v724 = vand.u32 %v83, 4294901760
    %725 = vmatpush.msra.mxu0 %v724
    %v726 = vand.u32 %v82, 4294901760
    %727 = vmatpush.msra.mxu0 %v726
    %v728 = vand.u32 %v81, 4294901760
    %729 = vmatpush.msra.mxu0 %v728
    %v730 = vand.u32 %v80, 4294901760
    %731 = vmatpush.msra.mxu0 %v730
    %v732 = vand.u32 %v79, 4294901760
    %733 = vmatpush.msra.mxu0 %v732
    %v734 = vand.u32 %v78, 4294901760
    %735 = vmatpush.msra.mxu0 %v734
    %v736 = vand.u32 %v77, 4294901760
    %737 = vmatpush.msra.mxu0 %v736
    %v738 = vand.u32 %v76, 4294901760
    %739 = vmatpush.msra.mxu0 %v738
    %v740 = vand.u32 %v75, 4294901760
    %741 = vmatpush.msra.mxu0 %v740
    %v742 = vand.u32 %v74, 4294901760
    %743 = vmatpush.msra.mxu0 %v742
    %v744 = vand.u32 %v73, 4294901760
    %745 = vmatpush.msra.mxu0 %v744
    %v746 = vand.u32 %v72, 4294901760
    %747 = vmatpush.msra.mxu0 %v746
    %v748 = vand.u32 %v71, 4294901760
    %749 = vmatpush.msra.mxu0 %v748
    %v750 = vand.u32 %v70, 4294901760
    %751 = vmatpush.msra.mxu0 %v750
    %v752 = vand.u32 %v69, 4294901760
    %753 = vmatpush.msra.mxu0 %v752
    %v754 = vand.u32 %v46, 4294901760
    %v755 = vsub.f32 %v46, %v754
    %v756 = vand.u32 %v755, 4294901760
    %757 = vmatmul.f32.gmra.mxu0 %v756
    %v758 = vpop.f32.mrf.mxu0
    %v759 = vadd.f32 %v720, %v758
    %760 = vdwg.mxu0
    %v761 = vand.u32 %v84, 4294901760
    %v762 = vsub.f32 %v84, %v761
    %v763 = vand.u32 %v762, 4294901760
    %764 = vmatpush.msra.mxu0 %v763
    %v765 = vand.u32 %v83, 4294901760
    %v766 = vsub.f32 %v83, %v765
    %v767 = vand.u32 %v766, 4294901760
    %768 = vmatpush.msra.mxu0 %v767
    %v769 = vand.u32 %v82, 4294901760
    %v770 = vsub.f32 %v82, %v769
    %v771 = vand.u32 %v770, 4294901760
    %772 = vmatpush.msra.mxu0 %v771
    %v773 = vand.u32 %v81, 4294901760
    %v774 = vsub.f32 %v81, %v773
    %v775 = vand.u32 %v774, 4294901760
    %776 = vmatpush.msra.mxu0 %v775
    %v777 = vand.u32 %v80, 4294901760
    %v778 = vsub.f32 %v80, %v777
    %v779 = vand.u32 %v778, 4294901760
    %780 = vmatpush.msra.mxu0 %v779
    %v781 = vand.u32 %v79, 4294901760
    %v782 = vsub.f32 %v79, %v781
    %v783 = vand.u32 %v782, 4294901760
    %784 = vmatpush.msra.mxu0 %v783
    %v785 = vand.u32 %v78, 4294901760
    %v786 = vsub.f32 %v78, %v785
    %v787 = vand.u32 %v786, 4294901760
    %788 = vmatpush.msra.mxu0 %v787
    %v789 = vand.u32 %v77, 4294901760
    %v790 = vsub.f32 %v77, %v789
    %v791 = vand.u32 %v790, 4294901760
    %792 = vmatpush.msra.mxu0 %v791
    %v793 = vand.u32 %v76, 4294901760
    %v794 = vsub.f32 %v76, %v793
    %v795 = vand.u32 %v794, 4294901760
    %796 = vmatpush.msra.mxu0 %v795
    %v797 = vand.u32 %v75, 4294901760
    %v798 = vsub.f32 %v75, %v797
    %v799 = vand.u32 %v798, 4294901760
    %800 = vmatpush.msra.mxu0 %v799
    %v801 = vand.u32 %v74, 4294901760
    %v802 = vsub.f32 %v74, %v801
    %v803 = vand.u32 %v802, 4294901760
    %804 = vmatpush.msra.mxu0 %v803
    %v805 = vand.u32 %v73, 4294901760
    %v806 = vsub.f32 %v73, %v805
    %v807 = vand.u32 %v806, 4294901760
    %808 = vmatpush.msra.mxu0 %v807
    %v809 = vand.u32 %v72, 4294901760
    %v810 = vsub.f32 %v72, %v809
    %v811 = vand.u32 %v810, 4294901760
    %812 = vmatpush.msra.mxu0 %v811
    %v813 = vand.u32 %v71, 4294901760
    %v814 = vsub.f32 %v71, %v813
    %v815 = vand.u32 %v814, 4294901760
    %816 = vmatpush.msra.mxu0 %v815
    %v817 = vand.u32 %v70, 4294901760
    %v818 = vsub.f32 %v70, %v817
    %v819 = vand.u32 %v818, 4294901760
    %820 = vmatpush.msra.mxu0 %v819
    %v821 = vand.u32 %v69, 4294901760
    %v822 = vsub.f32 %v69, %v821
    %v823 = vand.u32 %v822, 4294901760
    %824 = vmatpush.msra.mxu0 %v823
    %v825 = vand.u32 %v46, 4294901760
    %826 = vmatmul.f32.gmra.mxu0 %v825
    %v827 = vpop.f32.mrf.mxu0
    %v828 = vadd.f32 %v759, %v827
    %829 = vdwg.mxu0
    %v830 = vand.u32 %v84, 4294901760
    %831 = vmatpush.msra.mxu0 %v830
    %v832 = vand.u32 %v83, 4294901760
    %833 = vmatpush.msra.mxu0 %v832
    %v834 = vand.u32 %v82, 4294901760
    %835 = vmatpush.msra.mxu0 %v834
    %v836 = vand.u32 %v81, 4294901760
    %837 = vmatpush.msra.mxu0 %v836
    %v838 = vand.u32 %v80, 4294901760
    %839 = vmatpush.msra.mxu0 %v838
    %v840 = vand.u32 %v79, 4294901760
    %841 = vmatpush.msra.mxu0 %v840
    %v842 = vand.u32 %v78, 4294901760
    %843 = vmatpush.msra.mxu0 %v842
    %v844 = vand.u32 %v77, 4294901760
    %845 = vmatpush.msra.mxu0 %v844
    %v846 = vand.u32 %v76, 4294901760
    %847 = vmatpush.msra.mxu0 %v846
    %v848 = vand.u32 %v75, 4294901760
    %849 = vmatpush.msra.mxu0 %v848
    %v850 = vand.u32 %v74, 4294901760
    %851 = vmatpush.msra.mxu0 %v850
    %v852 = vand.u32 %v73, 4294901760
    %853 = vmatpush.msra.mxu0 %v852
    %v854 = vand.u32 %v72, 4294901760
    %855 = vmatpush.msra.mxu0 %v854
    %v856 = vand.u32 %v71, 4294901760
    %857 = vmatpush.msra.mxu0 %v856
    %v858 = vand.u32 %v70, 4294901760
    %859 = vmatpush.msra.mxu0 %v858
    %v860 = vand.u32 %v69, 4294901760
    %861 = vmatpush.msra.mxu0 %v860
    %v862 = vand.u32 %v46, 4294901760
    %863 = vmatmul.f32.gmra.mxu0 %v862
    %v864 = vpop.f32.mrf.mxu0
    %v865 = vadd.f32 %v828, %v864
    %866 = vdwg.mxu0
    %v867 = vand.u32 %v100, 4294901760
    %868 = vmatpush.msra.mxu0 %v867
    %v869 = vand.u32 %v99, 4294901760
    %870 = vmatpush.msra.mxu0 %v869
    %v871 = vand.u32 %v98, 4294901760
    %872 = vmatpush.msra.mxu0 %v871
    %v873 = vand.u32 %v97, 4294901760
    %874 = vmatpush.msra.mxu0 %v873
    %v875 = vand.u32 %v96, 4294901760
    %876 = vmatpush.msra.mxu0 %v875
    %v877 = vand.u32 %v95, 4294901760
    %878 = vmatpush.msra.mxu0 %v877
    %v879 = vand.u32 %v94, 4294901760
    %880 = vmatpush.msra.mxu0 %v879
    %v881 = vand.u32 %v93, 4294901760
    %882 = vmatpush.msra.mxu0 %v881
    %v883 = vand.u32 %v92, 4294901760
    %884 = vmatpush.msra.mxu0 %v883
    %v885 = vand.u32 %v91, 4294901760
    %886 = vmatpush.msra.mxu0 %v885
    %v887 = vand.u32 %v90, 4294901760
    %888 = vmatpush.msra.mxu0 %v887
    %v889 = vand.u32 %v89, 4294901760
    %890 = vmatpush.msra.mxu0 %v889
    %v891 = vand.u32 %v88, 4294901760
    %892 = vmatpush.msra.mxu0 %v891
    %v893 = vand.u32 %v87, 4294901760
    %894 = vmatpush.msra.mxu0 %v893
    %v895 = vand.u32 %v86, 4294901760
    %896 = vmatpush.msra.mxu0 %v895
    %v897 = vand.u32 %v85, 4294901760
    %898 = vmatpush.msra.mxu0 %v897
    %v899 = vand.u32 %v47, 4294901760
    %v900 = vsub.f32 %v47, %v899
    %v901 = vand.u32 %v900, 4294901760
    %v902 = vsub.f32 %v900, %v901
    %v903 = vand.u32 %v902, 4294901760
    %904 = vmatmul.f32.gmra.mxu0 %v903
    %v905 = vpop.f32.mrf.mxu0
    %v906 = vadd.f32 %v865, %v905
    %907 = vdwg.mxu0
    %v908 = vand.u32 %v100, 4294901760
    %v909 = vsub.f32 %v100, %v908
    %v910 = vand.u32 %v909, 4294901760
    %v911 = vsub.f32 %v909, %v910
    %v912 = vand.u32 %v911, 4294901760
    %913 = vmatpush.msra.mxu0 %v912
    %v914 = vand.u32 %v99, 4294901760
    %v915 = vsub.f32 %v99, %v914
    %v916 = vand.u32 %v915, 4294901760
    %v917 = vsub.f32 %v915, %v916
    %v918 = vand.u32 %v917, 4294901760
    %919 = vmatpush.msra.mxu0 %v918
    %v920 = vand.u32 %v98, 4294901760
    %v921 = vsub.f32 %v98, %v920
    %v922 = vand.u32 %v921, 4294901760
    %v923 = vsub.f32 %v921, %v922
    %v924 = vand.u32 %v923, 4294901760
    %925 = vmatpush.msra.mxu0 %v924
    %v926 = vand.u32 %v97, 4294901760
    %v927 = vsub.f32 %v97, %v926
    %v928 = vand.u32 %v927, 4294901760
    %v929 = vsub.f32 %v927, %v928
    %v930 = vand.u32 %v929, 4294901760
    %931 = vmatpush.msra.mxu0 %v930
    %v932 = vand.u32 %v96, 4294901760
    %v933 = vsub.f32 %v96, %v932
    %v934 = vand.u32 %v933, 4294901760
    %v935 = vsub.f32 %v933, %v934
    %v936 = vand.u32 %v935, 4294901760
    %937 = vmatpush.msra.mxu0 %v936
    %v938 = vand.u32 %v95, 4294901760
    %v939 = vsub.f32 %v95, %v938
    %v940 = vand.u32 %v939, 4294901760
    %v941 = vsub.f32 %v939, %v940
    %v942 = vand.u32 %v941, 4294901760
    %943 = vmatpush.msra.mxu0 %v942
    %v944 = vand.u32 %v94, 4294901760
    %v945 = vsub.f32 %v94, %v944
    %v946 = vand.u32 %v945, 4294901760
    %v947 = vsub.f32 %v945, %v946
    %v948 = vand.u32 %v947, 4294901760
    %949 = vmatpush.msra.mxu0 %v948
    %v950 = vand.u32 %v93, 4294901760
    %v951 = vsub.f32 %v93, %v950
    %v952 = vand.u32 %v951, 4294901760
    %v953 = vsub.f32 %v951, %v952
    %v954 = vand.u32 %v953, 4294901760
    %955 = vmatpush.msra.mxu0 %v954
    %v956 = vand.u32 %v92, 4294901760
    %v957 = vsub.f32 %v92, %v956
    %v958 = vand.u32 %v957, 4294901760
    %v959 = vsub.f32 %v957, %v958
    %v960 = vand.u32 %v959, 4294901760
    %961 = vmatpush.msra.mxu0 %v960
    %v962 = vand.u32 %v91, 4294901760
    %v963 = vsub.f32 %v91, %v962
    %v964 = vand.u32 %v963, 4294901760
    %v965 = vsub.f32 %v963, %v964
    %v966 = vand.u32 %v965, 4294901760
    %967 = vmatpush.msra.mxu0 %v966
    %v968 = vand.u32 %v90, 4294901760
    %v969 = vsub.f32 %v90, %v968
    %v970 = vand.u32 %v969, 4294901760
    %v971 = vsub.f32 %v969, %v970
    %v972 = vand.u32 %v971, 4294901760
    %973 = vmatpush.msra.mxu0 %v972
    %v974 = vand.u32 %v89, 4294901760
    %v975 = vsub.f32 %v89, %v974
    %v976 = vand.u32 %v975, 4294901760
    %v977 = vsub.f32 %v975, %v976
    %v978 = vand.u32 %v977, 4294901760
    %979 = vmatpush.msra.mxu0 %v978
    %v980 = vand.u32 %v88, 4294901760
    %v981 = vsub.f32 %v88, %v980
    %v982 = vand.u32 %v981, 4294901760
    %v983 = vsub.f32 %v981, %v982
    %v984 = vand.u32 %v983, 4294901760
    %985 = vmatpush.msra.mxu0 %v984
    %v986 = vand.u32 %v87, 4294901760
    %v987 = vsub.f32 %v87, %v986
    %v988 = vand.u32 %v987, 4294901760
    %v989 = vsub.f32 %v987, %v988
    %v990 = vand.u32 %v989, 4294901760
    %991 = vmatpush.msra.mxu0 %v990
    %v992 = vand.u32 %v86, 4294901760
    %v993 = vsub.f32 %v86, %v992
    %v994 = vand.u32 %v993, 4294901760
    %v995 = vsub.f32 %v993, %v994
    %v996 = vand.u32 %v995, 4294901760
    %997 = vmatpush.msra.mxu0 %v996
    %v998 = vand.u32 %v85, 4294901760
    %v999 = vsub.f32 %v85, %v998
    %v1000 = vand.u32 %v999, 4294901760
    %v1001 = vsub.f32 %v999, %v1000
    %v1002 = vand.u32 %v1001, 4294901760
    %1003 = vmatpush.msra.mxu0 %v1002
    %v1004 = vand.u32 %v47, 4294901760
    %1005 = vmatmul.f32.gmra.mxu0 %v1004
    %v1006 = vpop.f32.mrf.mxu0
    %v1007 = vadd.f32 %v906, %v1006
    %1008 = vdwg.mxu0
    %v1009 = vand.u32 %v100, 4294901760
    %v1010 = vsub.f32 %v100, %v1009
    %1011 = vmatpush.msra.mxu0 %v1010
    %v1012 = vand.u32 %v99, 4294901760
    %v1013 = vsub.f32 %v99, %v1012
    %1014 = vmatpush.msra.mxu0 %v1013
    %v1015 = vand.u32 %v98, 4294901760
    %v1016 = vsub.f32 %v98, %v1015
    %1017 = vmatpush.msra.mxu0 %v1016
    %v1018 = vand.u32 %v97, 4294901760
    %v1019 = vsub.f32 %v97, %v1018
    %1020 = vmatpush.msra.mxu0 %v1019
    %v1021 = vand.u32 %v96, 4294901760
    %v1022 = vsub.f32 %v96, %v1021
    %1023 = vmatpush.msra.mxu0 %v1022
    %v1024 = vand.u32 %v95, 4294901760
    %v1025 = vsub.f32 %v95, %v1024
    %1026 = vmatpush.msra.mxu0 %v1025
    %v1027 = vand.u32 %v94, 4294901760
    %v1028 = vsub.f32 %v94, %v1027
    %1029 = vmatpush.msra.mxu0 %v1028
    %v1030 = vand.u32 %v93, 4294901760
    %v1031 = vsub.f32 %v93, %v1030
    %1032 = vmatpush.msra.mxu0 %v1031
    %v1033 = vand.u32 %v92, 4294901760
    %v1034 = vsub.f32 %v92, %v1033
    %1035 = vmatpush.msra.mxu0 %v1034
    %v1036 = vand.u32 %v91, 4294901760
    %v1037 = vsub.f32 %v91, %v1036
    %1038 = vmatpush.msra.mxu0 %v1037
    %v1039 = vand.u32 %v90, 4294901760
    %v1040 = vsub.f32 %v90, %v1039
    %1041 = vmatpush.msra.mxu0 %v1040
    %v1042 = vand.u32 %v89, 4294901760
    %v1043 = vsub.f32 %v89, %v1042
    %1044 = vmatpush.msra.mxu0 %v1043
    %v1045 = vand.u32 %v88, 4294901760
    %v1046 = vsub.f32 %v88, %v1045
    %1047 = vmatpush.msra.mxu0 %v1046
    %v1048 = vand.u32 %v87, 4294901760
    %v1049 = vsub.f32 %v87, %v1048
    %1050 = vmatpush.msra.mxu0 %v1049
    %v1051 = vand.u32 %v86, 4294901760
    %v1052 = vsub.f32 %v86, %v1051
    %1053 = vmatpush.msra.mxu0 %v1052
    %v1054 = vand.u32 %v85, 4294901760
    %v1055 = vsub.f32 %v85, %v1054
    %1056 = vmatpush.msra.mxu0 %v1055
    %v1057 = vand.u32 %v47, 4294901760
    %v1058 = vsub.f32 %v47, %v1057
    %1059 = vmatmul.f32.gmra.mxu0 %v1058
    %v1060 = vpop.f32.mrf.mxu0
    %v1061 = vadd.f32 %v1007, %v1060
    %1062 = vdwg.mxu0
    %v1063 = vand.u32 %v100, 4294901760
    %1064 = vmatpush.msra.mxu0 %v1063
    %v1065 = vand.u32 %v99, 4294901760
    %1066 = vmatpush.msra.mxu0 %v1065
    %v1067 = vand.u32 %v98, 4294901760
    %1068 = vmatpush.msra.mxu0 %v1067
    %v1069 = vand.u32 %v97, 4294901760
    %1070 = vmatpush.msra.mxu0 %v1069
    %v1071 = vand.u32 %v96, 4294901760
    %1072 = vmatpush.msra.mxu0 %v1071
    %v1073 = vand.u32 %v95, 4294901760
    %1074 = vmatpush.msra.mxu0 %v1073
    %v1075 = vand.u32 %v94, 4294901760
    %1076 = vmatpush.msra.mxu0 %v1075
    %v1077 = vand.u32 %v93, 4294901760
    %1078 = vmatpush.msra.mxu0 %v1077
    %v1079 = vand.u32 %v92, 4294901760
    %1080 = vmatpush.msra.mxu0 %v1079
    %v1081 = vand.u32 %v91, 4294901760
    %1082 = vmatpush.msra.mxu0 %v1081
    %v1083 = vand.u32 %v90, 4294901760
    %1084 = vmatpush.msra.mxu0 %v1083
    %v1085 = vand.u32 %v89, 4294901760
    %1086 = vmatpush.msra.mxu0 %v1085
    %v1087 = vand.u32 %v88, 4294901760
    %1088 = vmatpush.msra.mxu0 %v1087
    %v1089 = vand.u32 %v87, 4294901760
    %1090 = vmatpush.msra.mxu0 %v1089
    %v1091 = vand.u32 %v86, 4294901760
    %1092 = vmatpush.msra.mxu0 %v1091
    %v1093 = vand.u32 %v85, 4294901760
    %1094 = vmatpush.msra.mxu0 %v1093
    %v1095 = vand.u32 %v47, 4294901760
    %v1096 = vsub.f32 %v47, %v1095
    %v1097 = vand.u32 %v1096, 4294901760
    %1098 = vmatmul.f32.gmra.mxu0 %v1097
    %v1099 = vpop.f32.mrf.mxu0
    %v1100 = vadd.f32 %v1061, %v1099
    %1101 = vdwg.mxu0
    %v1102 = vand.u32 %v100, 4294901760
    %v1103 = vsub.f32 %v100, %v1102
    %v1104 = vand.u32 %v1103, 4294901760
    %1105 = vmatpush.msra.mxu0 %v1104
    %v1106 = vand.u32 %v99, 4294901760
    %v1107 = vsub.f32 %v99, %v1106
    %v1108 = vand.u32 %v1107, 4294901760
    %1109 = vmatpush.msra.mxu0 %v1108
    %v1110 = vand.u32 %v98, 4294901760
    %v1111 = vsub.f32 %v98, %v1110
    %v1112 = vand.u32 %v1111, 4294901760
    %1113 = vmatpush.msra.mxu0 %v1112
    %v1114 = vand.u32 %v97, 4294901760
    %v1115 = vsub.f32 %v97, %v1114
    %v1116 = vand.u32 %v1115, 4294901760
    %1117 = vmatpush.msra.mxu0 %v1116
    %v1118 = vand.u32 %v96, 4294901760
    %v1119 = vsub.f32 %v96, %v1118
    %v1120 = vand.u32 %v1119, 4294901760
    %1121 = vmatpush.msra.mxu0 %v1120
    %v1122 = vand.u32 %v95, 4294901760
    %v1123 = vsub.f32 %v95, %v1122
    %v1124 = vand.u32 %v1123, 4294901760
    %1125 = vmatpush.msra.mxu0 %v1124
    %v1126 = vand.u32 %v94, 4294901760
    %v1127 = vsub.f32 %v94, %v1126
    %v1128 = vand.u32 %v1127, 4294901760
    %1129 = vmatpush.msra.mxu0 %v1128
    %v1130 = vand.u32 %v93, 4294901760
    %v1131 = vsub.f32 %v93, %v1130
    %v1132 = vand.u32 %v1131, 4294901760
    %1133 = vmatpush.msra.mxu0 %v1132
    %v1134 = vand.u32 %v92, 4294901760
    %v1135 = vsub.f32 %v92, %v1134
    %v1136 = vand.u32 %v1135, 4294901760
    %1137 = vmatpush.msra.mxu0 %v1136
    %v1138 = vand.u32 %v91, 4294901760
    %v1139 = vsub.f32 %v91, %v1138
    %v1140 = vand.u32 %v1139, 4294901760
    %1141 = vmatpush.msra.mxu0 %v1140
    %v1142 = vand.u32 %v90, 4294901760
    %v1143 = vsub.f32 %v90, %v1142
    %v1144 = vand.u32 %v1143, 4294901760
    %1145 = vmatpush.msra.mxu0 %v1144
    %v1146 = vand.u32 %v89, 4294901760
    %v1147 = vsub.f32 %v89, %v1146
    %v1148 = vand.u32 %v1147, 4294901760
    %1149 = vmatpush.msra.mxu0 %v1148
    %v1150 = vand.u32 %v88, 4294901760
    %v1151 = vsub.f32 %v88, %v1150
    %v1152 = vand.u32 %v1151, 4294901760
    %1153 = vmatpush.msra.mxu0 %v1152
    %v1154 = vand.u32 %v87, 4294901760
    %v1155 = vsub.f32 %v87, %v1154
    %v1156 = vand.u32 %v1155, 4294901760
    %1157 = vmatpush.msra.mxu0 %v1156
    %v1158 = vand.u32 %v86, 4294901760
    %v1159 = vsub.f32 %v86, %v1158
    %v1160 = vand.u32 %v1159, 4294901760
    %1161 = vmatpush.msra.mxu0 %v1160
    %v1162 = vand.u32 %v85, 4294901760
    %v1163 = vsub.f32 %v85, %v1162
    %v1164 = vand.u32 %v1163, 4294901760
    %1165 = vmatpush.msra.mxu0 %v1164
    %v1166 = vand.u32 %v47, 4294901760
    %1167 = vmatmul.f32.gmra.mxu0 %v1166
    %v1168 = vpop.f32.mrf.mxu0
    %v1169 = vadd.f32 %v1100, %v1168
    %1170 = vdwg.mxu0
    %v1171 = vand.u32 %v100, 4294901760
    %1172 = vmatpush.msra.mxu0 %v1171
    %v1173 = vand.u32 %v99, 4294901760
    %1174 = vmatpush.msra.mxu0 %v1173
    %v1175 = vand.u32 %v98, 4294901760
    %1176 = vmatpush.msra.mxu0 %v1175
    %v1177 = vand.u32 %v97, 4294901760
    %1178 = vmatpush.msra.mxu0 %v1177
    %v1179 = vand.u32 %v96, 4294901760
    %1180 = vmatpush.msra.mxu0 %v1179
    %v1181 = vand.u32 %v95, 4294901760
    %1182 = vmatpush.msra.mxu0 %v1181
    %v1183 = vand.u32 %v94, 4294901760
    %1184 = vmatpush.msra.mxu0 %v1183
    %v1185 = vand.u32 %v93, 4294901760
    %1186 = vmatpush.msra.mxu0 %v1185
    %v1187 = vand.u32 %v92, 4294901760
    %1188 = vmatpush.msra.mxu0 %v1187
    %v1189 = vand.u32 %v91, 4294901760
    %1190 = vmatpush.msra.mxu0 %v1189
    %v1191 = vand.u32 %v90, 4294901760
    %1192 = vmatpush.msra.mxu0 %v1191
    %v1193 = vand.u32 %v89, 4294901760
    %1194 = vmatpush.msra.mxu0 %v1193
    %v1195 = vand.u32 %v88, 4294901760
    %1196 = vmatpush.msra.mxu0 %v1195
    %v1197 = vand.u32 %v87, 4294901760
    %1198 = vmatpush.msra.mxu0 %v1197
    %v1199 = vand.u32 %v86, 4294901760
    %1200 = vmatpush.msra.mxu0 %v1199
    %v1201 = vand.u32 %v85, 4294901760
    %1202 = vmatpush.msra.mxu0 %v1201
    %v1203 = vand.u32 %v47, 4294901760
    %1204 = vmatmul.f32.gmra.mxu0 %v1203
    %v1205 = vpop.f32.mrf.mxu0
    %v1206 = vadd.f32 %v1169, %v1205
    %1207 = vdwg.mxu0
    %v1208 = vand.u32 %v116, 4294901760
    %1209 = vmatpush.msra.mxu0 %v1208
    %v1210 = vand.u32 %v115, 4294901760
    %1211 = vmatpush.msra.mxu0 %v1210
    %v1212 = vand.u32 %v114, 4294901760
    %1213 = vmatpush.msra.mxu0 %v1212
    %v1214 = vand.u32 %v113, 4294901760
    %1215 = vmatpush.msra.mxu0 %v1214
    %v1216 = vand.u32 %v112, 4294901760
    %1217 = vmatpush.msra.mxu0 %v1216
    %v1218 = vand.u32 %v111, 4294901760
    %1219 = vmatpush.msra.mxu0 %v1218
    %v1220 = vand.u32 %v110, 4294901760
    %1221 = vmatpush.msra.mxu0 %v1220
    %v1222 = vand.u32 %v109, 4294901760
    %1223 = vmatpush.msra.mxu0 %v1222
    %v1224 = vand.u32 %v108, 4294901760
    %1225 = vmatpush.msra.mxu0 %v1224
    %v1226 = vand.u32 %v107, 4294901760
    %1227 = vmatpush.msra.mxu0 %v1226
    %v1228 = vand.u32 %v106, 4294901760
    %1229 = vmatpush.msra.mxu0 %v1228
    %v1230 = vand.u32 %v105, 4294901760
    %1231 = vmatpush.msra.mxu0 %v1230
    %v1232 = vand.u32 %v104, 4294901760
    %1233 = vmatpush.msra.mxu0 %v1232
    %v1234 = vand.u32 %v103, 4294901760
    %1235 = vmatpush.msra.mxu0 %v1234
    %v1236 = vand.u32 %v102, 4294901760
    %1237 = vmatpush.msra.mxu0 %v1236
    %v1238 = vand.u32 %v101, 4294901760
    %1239 = vmatpush.msra.mxu0 %v1238
    %v1240 = vand.u32 %v48, 4294901760
    %v1241 = vsub.f32 %v48, %v1240
    %v1242 = vand.u32 %v1241, 4294901760
    %v1243 = vsub.f32 %v1241, %v1242
    %v1244 = vand.u32 %v1243, 4294901760
    %1245 = vmatmul.f32.gmra.mxu0 %v1244
    %v1246 = vpop.f32.mrf.mxu0
    %v1247 = vadd.f32 %v1206, %v1246
    %1248 = vdwg.mxu0
    %v1249 = vand.u32 %v116, 4294901760
    %v1250 = vsub.f32 %v116, %v1249
    %v1251 = vand.u32 %v1250, 4294901760
    %v1252 = vsub.f32 %v1250, %v1251
    %v1253 = vand.u32 %v1252, 4294901760
    %1254 = vmatpush.msra.mxu0 %v1253
    %v1255 = vand.u32 %v115, 4294901760
    %v1256 = vsub.f32 %v115, %v1255
    %v1257 = vand.u32 %v1256, 4294901760
    %v1258 = vsub.f32 %v1256, %v1257
    %v1259 = vand.u32 %v1258, 4294901760
    %1260 = vmatpush.msra.mxu0 %v1259
    %v1261 = vand.u32 %v114, 4294901760
    %v1262 = vsub.f32 %v114, %v1261
    %v1263 = vand.u32 %v1262, 4294901760
    %v1264 = vsub.f32 %v1262, %v1263
    %v1265 = vand.u32 %v1264, 4294901760
    %1266 = vmatpush.msra.mxu0 %v1265
    %v1267 = vand.u32 %v113, 4294901760
    %v1268 = vsub.f32 %v113, %v1267
    %v1269 = vand.u32 %v1268, 4294901760
    %v1270 = vsub.f32 %v1268, %v1269
    %v1271 = vand.u32 %v1270, 4294901760
    %1272 = vmatpush.msra.mxu0 %v1271
    %v1273 = vand.u32 %v112, 4294901760
    %v1274 = vsub.f32 %v112, %v1273
    %v1275 = vand.u32 %v1274, 4294901760
    %v1276 = vsub.f32 %v1274, %v1275
    %v1277 = vand.u32 %v1276, 4294901760
    %1278 = vmatpush.msra.mxu0 %v1277
    %v1279 = vand.u32 %v111, 4294901760
    %v1280 = vsub.f32 %v111, %v1279
    %v1281 = vand.u32 %v1280, 4294901760
    %v1282 = vsub.f32 %v1280, %v1281
    %v1283 = vand.u32 %v1282, 4294901760
    %1284 = vmatpush.msra.mxu0 %v1283
    %v1285 = vand.u32 %v110, 4294901760
    %v1286 = vsub.f32 %v110, %v1285
    %v1287 = vand.u32 %v1286, 4294901760
    %v1288 = vsub.f32 %v1286, %v1287
    %v1289 = vand.u32 %v1288, 4294901760
    %1290 = vmatpush.msra.mxu0 %v1289
    %v1291 = vand.u32 %v109, 4294901760
    %v1292 = vsub.f32 %v109, %v1291
    %v1293 = vand.u32 %v1292, 4294901760
    %v1294 = vsub.f32 %v1292, %v1293
    %v1295 = vand.u32 %v1294, 4294901760
    %1296 = vmatpush.msra.mxu0 %v1295
    %v1297 = vand.u32 %v108, 4294901760
    %v1298 = vsub.f32 %v108, %v1297
    %v1299 = vand.u32 %v1298, 4294901760
    %v1300 = vsub.f32 %v1298, %v1299
    %v1301 = vand.u32 %v1300, 4294901760
    %1302 = vmatpush.msra.mxu0 %v1301
    %v1303 = vand.u32 %v107, 4294901760
    %v1304 = vsub.f32 %v107, %v1303
    %v1305 = vand.u32 %v1304, 4294901760
    %v1306 = vsub.f32 %v1304, %v1305
    %v1307 = vand.u32 %v1306, 4294901760
    %1308 = vmatpush.msra.mxu0 %v1307
    %v1309 = vand.u32 %v106, 4294901760
    %v1310 = vsub.f32 %v106, %v1309
    %v1311 = vand.u32 %v1310, 4294901760
    %v1312 = vsub.f32 %v1310, %v1311
    %v1313 = vand.u32 %v1312, 4294901760
    %1314 = vmatpush.msra.mxu0 %v1313
    %v1315 = vand.u32 %v105, 4294901760
    %v1316 = vsub.f32 %v105, %v1315
    %v1317 = vand.u32 %v1316, 4294901760
    %v1318 = vsub.f32 %v1316, %v1317
    %v1319 = vand.u32 %v1318, 4294901760
    %1320 = vmatpush.msra.mxu0 %v1319
    %v1321 = vand.u32 %v104, 4294901760
    %v1322 = vsub.f32 %v104, %v1321
    %v1323 = vand.u32 %v1322, 4294901760
    %v1324 = vsub.f32 %v1322, %v1323
    %v1325 = vand.u32 %v1324, 4294901760
    %1326 = vmatpush.msra.mxu0 %v1325
    %v1327 = vand.u32 %v103, 4294901760
    %v1328 = vsub.f32 %v103, %v1327
    %v1329 = vand.u32 %v1328, 4294901760
    %v1330 = vsub.f32 %v1328, %v1329
    %v1331 = vand.u32 %v1330, 4294901760
    %1332 = vmatpush.msra.mxu0 %v1331
    %v1333 = vand.u32 %v102, 4294901760
    %v1334 = vsub.f32 %v102, %v1333
    %v1335 = vand.u32 %v1334, 4294901760
    %v1336 = vsub.f32 %v1334, %v1335
    %v1337 = vand.u32 %v1336, 4294901760
    %1338 = vmatpush.msra.mxu0 %v1337
    %v1339 = vand.u32 %v101, 4294901760
    %v1340 = vsub.f32 %v101, %v1339
    %v1341 = vand.u32 %v1340, 4294901760
    %v1342 = vsub.f32 %v1340, %v1341
    %v1343 = vand.u32 %v1342, 4294901760
    %1344 = vmatpush.msra.mxu0 %v1343
    %v1345 = vand.u32 %v48, 4294901760
    %1346 = vmatmul.f32.gmra.mxu0 %v1345
    %v1347 = vpop.f32.mrf.mxu0
    %v1348 = vadd.f32 %v1247, %v1347
    %1349 = vdwg.mxu0
    %v1350 = vand.u32 %v116, 4294901760
    %v1351 = vsub.f32 %v116, %v1350
    %1352 = vmatpush.msra.mxu0 %v1351
    %v1353 = vand.u32 %v115, 4294901760
    %v1354 = vsub.f32 %v115, %v1353
    %1355 = vmatpush.msra.mxu0 %v1354
    %v1356 = vand.u32 %v114, 4294901760
    %v1357 = vsub.f32 %v114, %v1356
    %1358 = vmatpush.msra.mxu0 %v1357
    %v1359 = vand.u32 %v113, 4294901760
    %v1360 = vsub.f32 %v113, %v1359
    %1361 = vmatpush.msra.mxu0 %v1360
    %v1362 = vand.u32 %v112, 4294901760
    %v1363 = vsub.f32 %v112, %v1362
    %1364 = vmatpush.msra.mxu0 %v1363
    %v1365 = vand.u32 %v111, 4294901760
    %v1366 = vsub.f32 %v111, %v1365
    %1367 = vmatpush.msra.mxu0 %v1366
    %v1368 = vand.u32 %v110, 4294901760
    %v1369 = vsub.f32 %v110, %v1368
    %1370 = vmatpush.msra.mxu0 %v1369
    %v1371 = vand.u32 %v109, 4294901760
    %v1372 = vsub.f32 %v109, %v1371
    %1373 = vmatpush.msra.mxu0 %v1372
    %v1374 = vand.u32 %v108, 4294901760
    %v1375 = vsub.f32 %v108, %v1374
    %1376 = vmatpush.msra.mxu0 %v1375
    %v1377 = vand.u32 %v107, 4294901760
    %v1378 = vsub.f32 %v107, %v1377
    %1379 = vmatpush.msra.mxu0 %v1378
    %v1380 = vand.u32 %v106, 4294901760
    %v1381 = vsub.f32 %v106, %v1380
    %1382 = vmatpush.msra.mxu0 %v1381
    %v1383 = vand.u32 %v105, 4294901760
    %v1384 = vsub.f32 %v105, %v1383
    %1385 = vmatpush.msra.mxu0 %v1384
    %v1386 = vand.u32 %v104, 4294901760
    %v1387 = vsub.f32 %v104, %v1386
    %1388 = vmatpush.msra.mxu0 %v1387
    %v1389 = vand.u32 %v103, 4294901760
    %v1390 = vsub.f32 %v103, %v1389
    %1391 = vmatpush.msra.mxu0 %v1390
    %v1392 = vand.u32 %v102, 4294901760
    %v1393 = vsub.f32 %v102, %v1392
    %1394 = vmatpush.msra.mxu0 %v1393
    %v1395 = vand.u32 %v101, 4294901760
    %v1396 = vsub.f32 %v101, %v1395
    %1397 = vmatpush.msra.mxu0 %v1396
    %v1398 = vand.u32 %v48, 4294901760
    %v1399 = vsub.f32 %v48, %v1398
    %1400 = vmatmul.f32.gmra.mxu0 %v1399
    %v1401 = vpop.f32.mrf.mxu0
    %v1402 = vadd.f32 %v1348, %v1401
    %1403 = vdwg.mxu0
    %v1404 = vand.u32 %v116, 4294901760
    %1405 = vmatpush.msra.mxu0 %v1404
    %v1406 = vand.u32 %v115, 4294901760
    %1407 = vmatpush.msra.mxu0 %v1406
    %v1408 = vand.u32 %v114, 4294901760
    %1409 = vmatpush.msra.mxu0 %v1408
    %v1410 = vand.u32 %v113, 4294901760
    %1411 = vmatpush.msra.mxu0 %v1410
    %v1412 = vand.u32 %v112, 4294901760
    %1413 = vmatpush.msra.mxu0 %v1412
    %v1414 = vand.u32 %v111, 4294901760
    %1415 = vmatpush.msra.mxu0 %v1414
    %v1416 = vand.u32 %v110, 4294901760
    %1417 = vmatpush.msra.mxu0 %v1416
    %v1418 = vand.u32 %v109, 4294901760
    %1419 = vmatpush.msra.mxu0 %v1418
    %v1420 = vand.u32 %v108, 4294901760
    %1421 = vmatpush.msra.mxu0 %v1420
    %v1422 = vand.u32 %v107, 4294901760
    %1423 = vmatpush.msra.mxu0 %v1422
    %v1424 = vand.u32 %v106, 4294901760
    %1425 = vmatpush.msra.mxu0 %v1424
    %v1426 = vand.u32 %v105, 4294901760
    %1427 = vmatpush.msra.mxu0 %v1426
    %v1428 = vand.u32 %v104, 4294901760
    %1429 = vmatpush.msra.mxu0 %v1428
    %v1430 = vand.u32 %v103, 4294901760
    %1431 = vmatpush.msra.mxu0 %v1430
    %v1432 = vand.u32 %v102, 4294901760
    %1433 = vmatpush.msra.mxu0 %v1432
    %v1434 = vand.u32 %v101, 4294901760
    %1435 = vmatpush.msra.mxu0 %v1434
    %v1436 = vand.u32 %v48, 4294901760
    %v1437 = vsub.f32 %v48, %v1436
    %v1438 = vand.u32 %v1437, 4294901760
    %1439 = vmatmul.f32.gmra.mxu0 %v1438
    %v1440 = vpop.f32.mrf.mxu0
    %v1441 = vadd.f32 %v1402, %v1440
    %1442 = vdwg.mxu0
    %v1443 = vand.u32 %v116, 4294901760
    %v1444 = vsub.f32 %v116, %v1443
    %v1445 = vand.u32 %v1444, 4294901760
    %1446 = vmatpush.msra.mxu0 %v1445
    %v1447 = vand.u32 %v115, 4294901760
    %v1448 = vsub.f32 %v115, %v1447
    %v1449 = vand.u32 %v1448, 4294901760
    %1450 = vmatpush.msra.mxu0 %v1449
    %v1451 = vand.u32 %v114, 4294901760
    %v1452 = vsub.f32 %v114, %v1451
    %v1453 = vand.u32 %v1452, 4294901760
    %1454 = vmatpush.msra.mxu0 %v1453
    %v1455 = vand.u32 %v113, 4294901760
    %v1456 = vsub.f32 %v113, %v1455
    %v1457 = vand.u32 %v1456, 4294901760
    %1458 = vmatpush.msra.mxu0 %v1457
    %v1459 = vand.u32 %v112, 4294901760
    %v1460 = vsub.f32 %v112, %v1459
    %v1461 = vand.u32 %v1460, 4294901760
    %1462 = vmatpush.msra.mxu0 %v1461
    %v1463 = vand.u32 %v111, 4294901760
    %v1464 = vsub.f32 %v111, %v1463
    %v1465 = vand.u32 %v1464, 4294901760
    %1466 = vmatpush.msra.mxu0 %v1465
    %v1467 = vand.u32 %v110, 4294901760
    %v1468 = vsub.f32 %v110, %v1467
    %v1469 = vand.u32 %v1468, 4294901760
    %1470 = vmatpush.msra.mxu0 %v1469
    %v1471 = vand.u32 %v109, 4294901760
    %v1472 = vsub.f32 %v109, %v1471
    %v1473 = vand.u32 %v1472, 4294901760
    %1474 = vmatpush.msra.mxu0 %v1473
    %v1475 = vand.u32 %v108, 4294901760
    %v1476 = vsub.f32 %v108, %v1475
    %v1477 = vand.u32 %v1476, 4294901760
    %1478 = vmatpush.msra.mxu0 %v1477
    %v1479 = vand.u32 %v107, 4294901760
    %v1480 = vsub.f32 %v107, %v1479
    %v1481 = vand.u32 %v1480, 4294901760
    %1482 = vmatpush.msra.mxu0 %v1481
    %v1483 = vand.u32 %v106, 4294901760
    %v1484 = vsub.f32 %v106, %v1483
    %v1485 = vand.u32 %v1484, 4294901760
    %1486 = vmatpush.msra.mxu0 %v1485
    %v1487 = vand.u32 %v105, 4294901760
    %v1488 = vsub.f32 %v105, %v1487
    %v1489 = vand.u32 %v1488, 4294901760
    %1490 = vmatpush.msra.mxu0 %v1489
    %v1491 = vand.u32 %v104, 4294901760
    %v1492 = vsub.f32 %v104, %v1491
    %v1493 = vand.u32 %v1492, 4294901760
    %1494 = vmatpush.msra.mxu0 %v1493
    %v1495 = vand.u32 %v103, 4294901760
    %v1496 = vsub.f32 %v103, %v1495
    %v1497 = vand.u32 %v1496, 4294901760
    %1498 = vmatpush.msra.mxu0 %v1497
    %v1499 = vand.u32 %v102, 4294901760
    %v1500 = vsub.f32 %v102, %v1499
    %v1501 = vand.u32 %v1500, 4294901760
    %1502 = vmatpush.msra.mxu0 %v1501
    %v1503 = vand.u32 %v101, 4294901760
    %v1504 = vsub.f32 %v101, %v1503
    %v1505 = vand.u32 %v1504, 4294901760
    %1506 = vmatpush.msra.mxu0 %v1505
    %v1507 = vand.u32 %v48, 4294901760
    %1508 = vmatmul.f32.gmra.mxu0 %v1507
    %v1509 = vpop.f32.mrf.mxu0
    %v1510 = vadd.f32 %v1441, %v1509
    %1511 = vdwg.mxu0
    %v1512 = vand.u32 %v116, 4294901760
    %1513 = vmatpush.msra.mxu0 %v1512
    %v1514 = vand.u32 %v115, 4294901760
    %1515 = vmatpush.msra.mxu0 %v1514
    %v1516 = vand.u32 %v114, 4294901760
    %1517 = vmatpush.msra.mxu0 %v1516
    %v1518 = vand.u32 %v113, 4294901760
    %1519 = vmatpush.msra.mxu0 %v1518
    %v1520 = vand.u32 %v112, 4294901760
    %1521 = vmatpush.msra.mxu0 %v1520
    %v1522 = vand.u32 %v111, 4294901760
    %1523 = vmatpush.msra.mxu0 %v1522
    %v1524 = vand.u32 %v110, 4294901760
    %1525 = vmatpush.msra.mxu0 %v1524
    %v1526 = vand.u32 %v109, 4294901760
    %1527 = vmatpush.msra.mxu0 %v1526
    %v1528 = vand.u32 %v108, 4294901760
    %1529 = vmatpush.msra.mxu0 %v1528
    %v1530 = vand.u32 %v107, 4294901760
    %1531 = vmatpush.msra.mxu0 %v1530
    %v1532 = vand.u32 %v106, 4294901760
    %1533 = vmatpush.msra.mxu0 %v1532
    %v1534 = vand.u32 %v105, 4294901760
    %1535 = vmatpush.msra.mxu0 %v1534
    %v1536 = vand.u32 %v104, 4294901760
    %1537 = vmatpush.msra.mxu0 %v1536
    %v1538 = vand.u32 %v103, 4294901760
    %1539 = vmatpush.msra.mxu0 %v1538
    %v1540 = vand.u32 %v102, 4294901760
    %1541 = vmatpush.msra.mxu0 %v1540
    %v1542 = vand.u32 %v101, 4294901760
    %1543 = vmatpush.msra.mxu0 %v1542
    %v1544 = vand.u32 %v48, 4294901760
    %1545 = vmatmul.f32.gmra.mxu0 %v1544
    %v1546 = vpop.f32.mrf.mxu0
    %v1547 = vadd.f32 %v1510, %v1546
    %1548 = vdwg.mxu0
    %v1549 = vand.u32 %v132, 4294901760
    %1550 = vmatpush.msra.mxu0 %v1549
    %v1551 = vand.u32 %v131, 4294901760
    %1552 = vmatpush.msra.mxu0 %v1551
    %v1553 = vand.u32 %v130, 4294901760
    %1554 = vmatpush.msra.mxu0 %v1553
    %v1555 = vand.u32 %v129, 4294901760
    %1556 = vmatpush.msra.mxu0 %v1555
    %v1557 = vand.u32 %v128, 4294901760
    %1558 = vmatpush.msra.mxu0 %v1557
    %v1559 = vand.u32 %v127, 4294901760
    %1560 = vmatpush.msra.mxu0 %v1559
    %v1561 = vand.u32 %v126, 4294901760
    %1562 = vmatpush.msra.mxu0 %v1561
    %v1563 = vand.u32 %v125, 4294901760
    %1564 = vmatpush.msra.mxu0 %v1563
    %v1565 = vand.u32 %v124, 4294901760
    %1566 = vmatpush.msra.mxu0 %v1565
    %v1567 = vand.u32 %v123, 4294901760
    %1568 = vmatpush.msra.mxu0 %v1567
    %v1569 = vand.u32 %v122, 4294901760
    %1570 = vmatpush.msra.mxu0 %v1569
    %v1571 = vand.u32 %v121, 4294901760
    %1572 = vmatpush.msra.mxu0 %v1571
    %v1573 = vand.u32 %v120, 4294901760
    %1574 = vmatpush.msra.mxu0 %v1573
    %v1575 = vand.u32 %v119, 4294901760
    %1576 = vmatpush.msra.mxu0 %v1575
    %v1577 = vand.u32 %v118, 4294901760
    %1578 = vmatpush.msra.mxu0 %v1577
    %v1579 = vand.u32 %v117, 4294901760
    %1580 = vmatpush.msra.mxu0 %v1579
    %v1581 = vand.u32 %v49, 4294901760
    %v1582 = vsub.f32 %v49, %v1581
    %v1583 = vand.u32 %v1582, 4294901760
    %v1584 = vsub.f32 %v1582, %v1583
    %v1585 = vand.u32 %v1584, 4294901760
    %1586 = vmatmul.f32.gmra.mxu0 %v1585
    %v1587 = vpop.f32.mrf.mxu0
    %v1588 = vadd.f32 %v1547, %v1587
    %1589 = vdwg.mxu0
    %v1590 = vand.u32 %v132, 4294901760
    %v1591 = vsub.f32 %v132, %v1590
    %v1592 = vand.u32 %v1591, 4294901760
    %v1593 = vsub.f32 %v1591, %v1592
    %v1594 = vand.u32 %v1593, 4294901760
    %1595 = vmatpush.msra.mxu0 %v1594
    %v1596 = vand.u32 %v131, 4294901760
    %v1597 = vsub.f32 %v131, %v1596
    %v1598 = vand.u32 %v1597, 4294901760
    %v1599 = vsub.f32 %v1597, %v1598
    %v1600 = vand.u32 %v1599, 4294901760
    %1601 = vmatpush.msra.mxu0 %v1600
    %v1602 = vand.u32 %v130, 4294901760
    %v1603 = vsub.f32 %v130, %v1602
    %v1604 = vand.u32 %v1603, 4294901760
    %v1605 = vsub.f32 %v1603, %v1604
    %v1606 = vand.u32 %v1605, 4294901760
    %1607 = vmatpush.msra.mxu0 %v1606
    %v1608 = vand.u32 %v129, 4294901760
    %v1609 = vsub.f32 %v129, %v1608
    %v1610 = vand.u32 %v1609, 4294901760
    %v1611 = vsub.f32 %v1609, %v1610
    %v1612 = vand.u32 %v1611, 4294901760
    %1613 = vmatpush.msra.mxu0 %v1612
    %v1614 = vand.u32 %v128, 4294901760
    %v1615 = vsub.f32 %v128, %v1614
    %v1616 = vand.u32 %v1615, 4294901760
    %v1617 = vsub.f32 %v1615, %v1616
    %v1618 = vand.u32 %v1617, 4294901760
    %1619 = vmatpush.msra.mxu0 %v1618
    %v1620 = vand.u32 %v127, 4294901760
    %v1621 = vsub.f32 %v127, %v1620
    %v1622 = vand.u32 %v1621, 4294901760
    %v1623 = vsub.f32 %v1621, %v1622
    %v1624 = vand.u32 %v1623, 4294901760
    %1625 = vmatpush.msra.mxu0 %v1624
    %v1626 = vand.u32 %v126, 4294901760
    %v1627 = vsub.f32 %v126, %v1626
    %v1628 = vand.u32 %v1627, 4294901760
    %v1629 = vsub.f32 %v1627, %v1628
    %v1630 = vand.u32 %v1629, 4294901760
    %1631 = vmatpush.msra.mxu0 %v1630
    %v1632 = vand.u32 %v125, 4294901760
    %v1633 = vsub.f32 %v125, %v1632
    %v1634 = vand.u32 %v1633, 4294901760
    %v1635 = vsub.f32 %v1633, %v1634
    %v1636 = vand.u32 %v1635, 4294901760
    %1637 = vmatpush.msra.mxu0 %v1636
    %v1638 = vand.u32 %v124, 4294901760
    %v1639 = vsub.f32 %v124, %v1638
    %v1640 = vand.u32 %v1639, 4294901760
    %v1641 = vsub.f32 %v1639, %v1640
    %v1642 = vand.u32 %v1641, 4294901760
    %1643 = vmatpush.msra.mxu0 %v1642
    %v1644 = vand.u32 %v123, 4294901760
    %v1645 = vsub.f32 %v123, %v1644
    %v1646 = vand.u32 %v1645, 4294901760
    %v1647 = vsub.f32 %v1645, %v1646
    %v1648 = vand.u32 %v1647, 4294901760
    %1649 = vmatpush.msra.mxu0 %v1648
    %v1650 = vand.u32 %v122, 4294901760
    %v1651 = vsub.f32 %v122, %v1650
    %v1652 = vand.u32 %v1651, 4294901760
    %v1653 = vsub.f32 %v1651, %v1652
    %v1654 = vand.u32 %v1653, 4294901760
    %1655 = vmatpush.msra.mxu0 %v1654
    %v1656 = vand.u32 %v121, 4294901760
    %v1657 = vsub.f32 %v121, %v1656
    %v1658 = vand.u32 %v1657, 4294901760
    %v1659 = vsub.f32 %v1657, %v1658
    %v1660 = vand.u32 %v1659, 4294901760
    %1661 = vmatpush.msra.mxu0 %v1660
    %v1662 = vand.u32 %v120, 4294901760
    %v1663 = vsub.f32 %v120, %v1662
    %v1664 = vand.u32 %v1663, 4294901760
    %v1665 = vsub.f32 %v1663, %v1664
    %v1666 = vand.u32 %v1665, 4294901760
    %1667 = vmatpush.msra.mxu0 %v1666
    %v1668 = vand.u32 %v119, 4294901760
    %v1669 = vsub.f32 %v119, %v1668
    %v1670 = vand.u32 %v1669, 4294901760
    %v1671 = vsub.f32 %v1669, %v1670
    %v1672 = vand.u32 %v1671, 4294901760
    %1673 = vmatpush.msra.mxu0 %v1672
    %v1674 = vand.u32 %v118, 4294901760
    %v1675 = vsub.f32 %v118, %v1674
    %v1676 = vand.u32 %v1675, 4294901760
    %v1677 = vsub.f32 %v1675, %v1676
    %v1678 = vand.u32 %v1677, 4294901760
    %1679 = vmatpush.msra.mxu0 %v1678
    %v1680 = vand.u32 %v117, 4294901760
    %v1681 = vsub.f32 %v117, %v1680
    %v1682 = vand.u32 %v1681, 4294901760
    %v1683 = vsub.f32 %v1681, %v1682
    %v1684 = vand.u32 %v1683, 4294901760
    %1685 = vmatpush.msra.mxu0 %v1684
    %v1686 = vand.u32 %v49, 4294901760
    %1687 = vmatmul.f32.gmra.mxu0 %v1686
    %v1688 = vpop.f32.mrf.mxu0
    %v1689 = vadd.f32 %v1588, %v1688
    %1690 = vdwg.mxu0
    %v1691 = vand.u32 %v132, 4294901760
    %v1692 = vsub.f32 %v132, %v1691
    %1693 = vmatpush.msra.mxu0 %v1692
    %v1694 = vand.u32 %v131, 4294901760
    %v1695 = vsub.f32 %v131, %v1694
    %1696 = vmatpush.msra.mxu0 %v1695
    %v1697 = vand.u32 %v130, 4294901760
    %v1698 = vsub.f32 %v130, %v1697
    %1699 = vmatpush.msra.mxu0 %v1698
    %v1700 = vand.u32 %v129, 4294901760
    %v1701 = vsub.f32 %v129, %v1700
    %1702 = vmatpush.msra.mxu0 %v1701
    %v1703 = vand.u32 %v128, 4294901760
    %v1704 = vsub.f32 %v128, %v1703
    %1705 = vmatpush.msra.mxu0 %v1704
    %v1706 = vand.u32 %v127, 4294901760
    %v1707 = vsub.f32 %v127, %v1706
    %1708 = vmatpush.msra.mxu0 %v1707
    %v1709 = vand.u32 %v126, 4294901760
    %v1710 = vsub.f32 %v126, %v1709
    %1711 = vmatpush.msra.mxu0 %v1710
    %v1712 = vand.u32 %v125, 4294901760
    %v1713 = vsub.f32 %v125, %v1712
    %1714 = vmatpush.msra.mxu0 %v1713
    %v1715 = vand.u32 %v124, 4294901760
    %v1716 = vsub.f32 %v124, %v1715
    %1717 = vmatpush.msra.mxu0 %v1716
    %v1718 = vand.u32 %v123, 4294901760
    %v1719 = vsub.f32 %v123, %v1718
    %1720 = vmatpush.msra.mxu0 %v1719
    %v1721 = vand.u32 %v122, 4294901760
    %v1722 = vsub.f32 %v122, %v1721
    %1723 = vmatpush.msra.mxu0 %v1722
    %v1724 = vand.u32 %v121, 4294901760
    %v1725 = vsub.f32 %v121, %v1724
    %1726 = vmatpush.msra.mxu0 %v1725
    %v1727 = vand.u32 %v120, 4294901760
    %v1728 = vsub.f32 %v120, %v1727
    %1729 = vmatpush.msra.mxu0 %v1728
    %v1730 = vand.u32 %v119, 4294901760
    %v1731 = vsub.f32 %v119, %v1730
    %1732 = vmatpush.msra.mxu0 %v1731
    %v1733 = vand.u32 %v118, 4294901760
    %v1734 = vsub.f32 %v118, %v1733
    %1735 = vmatpush.msra.mxu0 %v1734
    %v1736 = vand.u32 %v117, 4294901760
    %v1737 = vsub.f32 %v117, %v1736
    %1738 = vmatpush.msra.mxu0 %v1737
    %v1739 = vand.u32 %v49, 4294901760
    %v1740 = vsub.f32 %v49, %v1739
    %1741 = vmatmul.f32.gmra.mxu0 %v1740
    %v1742 = vpop.f32.mrf.mxu0
    %v1743 = vadd.f32 %v1689, %v1742
    %1744 = vdwg.mxu0
    %v1745 = vand.u32 %v132, 4294901760
    %1746 = vmatpush.msra.mxu0 %v1745
    %v1747 = vand.u32 %v131, 4294901760
    %1748 = vmatpush.msra.mxu0 %v1747
    %v1749 = vand.u32 %v130, 4294901760
    %1750 = vmatpush.msra.mxu0 %v1749
    %v1751 = vand.u32 %v129, 4294901760
    %1752 = vmatpush.msra.mxu0 %v1751
    %v1753 = vand.u32 %v128, 4294901760
    %1754 = vmatpush.msra.mxu0 %v1753
    %v1755 = vand.u32 %v127, 4294901760
    %1756 = vmatpush.msra.mxu0 %v1755
    %v1757 = vand.u32 %v126, 4294901760
    %1758 = vmatpush.msra.mxu0 %v1757
    %v1759 = vand.u32 %v125, 4294901760
    %1760 = vmatpush.msra.mxu0 %v1759
    %v1761 = vand.u32 %v124, 4294901760
    %1762 = vmatpush.msra.mxu0 %v1761
    %v1763 = vand.u32 %v123, 4294901760
    %1764 = vmatpush.msra.mxu0 %v1763
    %v1765 = vand.u32 %v122, 4294901760
    %1766 = vmatpush.msra.mxu0 %v1765
    %v1767 = vand.u32 %v121, 4294901760
    %1768 = vmatpush.msra.mxu0 %v1767
    %v1769 = vand.u32 %v120, 4294901760
    %1770 = vmatpush.msra.mxu0 %v1769
    %v1771 = vand.u32 %v119, 4294901760
    %1772 = vmatpush.msra.mxu0 %v1771
    %v1773 = vand.u32 %v118, 4294901760
    %1774 = vmatpush.msra.mxu0 %v1773
    %v1775 = vand.u32 %v117, 4294901760
    %1776 = vmatpush.msra.mxu0 %v1775
    %v1777 = vand.u32 %v49, 4294901760
    %v1778 = vsub.f32 %v49, %v1777
    %v1779 = vand.u32 %v1778, 4294901760
    %1780 = vmatmul.f32.gmra.mxu0 %v1779
    %v1781 = vpop.f32.mrf.mxu0
    %v1782 = vadd.f32 %v1743, %v1781
    %1783 = vdwg.mxu0
    %v1784 = vand.u32 %v132, 4294901760
    %v1785 = vsub.f32 %v132, %v1784
    %v1786 = vand.u32 %v1785, 4294901760
    %1787 = vmatpush.msra.mxu0 %v1786
    %v1788 = vand.u32 %v131, 4294901760
    %v1789 = vsub.f32 %v131, %v1788
    %v1790 = vand.u32 %v1789, 4294901760
    %1791 = vmatpush.msra.mxu0 %v1790
    %v1792 = vand.u32 %v130, 4294901760
    %v1793 = vsub.f32 %v130, %v1792
    %v1794 = vand.u32 %v1793, 4294901760
    %1795 = vmatpush.msra.mxu0 %v1794
    %v1796 = vand.u32 %v129, 4294901760
    %v1797 = vsub.f32 %v129, %v1796
    %v1798 = vand.u32 %v1797, 4294901760
    %1799 = vmatpush.msra.mxu0 %v1798
    %v1800 = vand.u32 %v128, 4294901760
    %v1801 = vsub.f32 %v128, %v1800
    %v1802 = vand.u32 %v1801, 4294901760
    %1803 = vmatpush.msra.mxu0 %v1802
    %v1804 = vand.u32 %v127, 4294901760
    %v1805 = vsub.f32 %v127, %v1804
    %v1806 = vand.u32 %v1805, 4294901760
    %1807 = vmatpush.msra.mxu0 %v1806
    %v1808 = vand.u32 %v126, 4294901760
    %v1809 = vsub.f32 %v126, %v1808
    %v1810 = vand.u32 %v1809, 4294901760
    %1811 = vmatpush.msra.mxu0 %v1810
    %v1812 = vand.u32 %v125, 4294901760
    %v1813 = vsub.f32 %v125, %v1812
    %v1814 = vand.u32 %v1813, 4294901760
    %1815 = vmatpush.msra.mxu0 %v1814
    %v1816 = vand.u32 %v124, 4294901760
    %v1817 = vsub.f32 %v124, %v1816
    %v1818 = vand.u32 %v1817, 4294901760
    %1819 = vmatpush.msra.mxu0 %v1818
    %v1820 = vand.u32 %v123, 4294901760
    %v1821 = vsub.f32 %v123, %v1820
    %v1822 = vand.u32 %v1821, 4294901760
    %1823 = vmatpush.msra.mxu0 %v1822
    %v1824 = vand.u32 %v122, 4294901760
    %v1825 = vsub.f32 %v122, %v1824
    %v1826 = vand.u32 %v1825, 4294901760
    %1827 = vmatpush.msra.mxu0 %v1826
    %v1828 = vand.u32 %v121, 4294901760
    %v1829 = vsub.f32 %v121, %v1828
    %v1830 = vand.u32 %v1829, 4294901760
    %1831 = vmatpush.msra.mxu0 %v1830
    %v1832 = vand.u32 %v120, 4294901760
    %v1833 = vsub.f32 %v120, %v1832
    %v1834 = vand.u32 %v1833, 4294901760
    %1835 = vmatpush.msra.mxu0 %v1834
    %v1836 = vand.u32 %v119, 4294901760
    %v1837 = vsub.f32 %v119, %v1836
    %v1838 = vand.u32 %v1837, 4294901760
    %1839 = vmatpush.msra.mxu0 %v1838
    %v1840 = vand.u32 %v118, 4294901760
    %v1841 = vsub.f32 %v118, %v1840
    %v1842 = vand.u32 %v1841, 4294901760
    %1843 = vmatpush.msra.mxu0 %v1842
    %v1844 = vand.u32 %v117, 4294901760
    %v1845 = vsub.f32 %v117, %v1844
    %v1846 = vand.u32 %v1845, 4294901760
    %1847 = vmatpush.msra.mxu0 %v1846
    %v1848 = vand.u32 %v49, 4294901760
    %1849 = vmatmul.f32.gmra.mxu0 %v1848
    %v1850 = vpop.f32.mrf.mxu0
    %v1851 = vadd.f32 %v1782, %v1850
    %1852 = vdwg.mxu0
    %v1853 = vand.u32 %v132, 4294901760
    %1854 = vmatpush.msra.mxu0 %v1853
    %v1855 = vand.u32 %v131, 4294901760
    %1856 = vmatpush.msra.mxu0 %v1855
    %v1857 = vand.u32 %v130, 4294901760
    %1858 = vmatpush.msra.mxu0 %v1857
    %v1859 = vand.u32 %v129, 4294901760
    %1860 = vmatpush.msra.mxu0 %v1859
    %v1861 = vand.u32 %v128, 4294901760
    %1862 = vmatpush.msra.mxu0 %v1861
    %v1863 = vand.u32 %v127, 4294901760
    %1864 = vmatpush.msra.mxu0 %v1863
    %v1865 = vand.u32 %v126, 4294901760
    %1866 = vmatpush.msra.mxu0 %v1865
    %v1867 = vand.u32 %v125, 4294901760
    %1868 = vmatpush.msra.mxu0 %v1867
    %v1869 = vand.u32 %v124, 4294901760
    %1870 = vmatpush.msra.mxu0 %v1869
    %v1871 = vand.u32 %v123, 4294901760
    %1872 = vmatpush.msra.mxu0 %v1871
    %v1873 = vand.u32 %v122, 4294901760
    %1874 = vmatpush.msra.mxu0 %v1873
    %v1875 = vand.u32 %v121, 4294901760
    %1876 = vmatpush.msra.mxu0 %v1875
    %v1877 = vand.u32 %v120, 4294901760
    %1878 = vmatpush.msra.mxu0 %v1877
    %v1879 = vand.u32 %v119, 4294901760
    %1880 = vmatpush.msra.mxu0 %v1879
    %v1881 = vand.u32 %v118, 4294901760
    %1882 = vmatpush.msra.mxu0 %v1881
    %v1883 = vand.u32 %v117, 4294901760
    %1884 = vmatpush.msra.mxu0 %v1883
    %v1885 = vand.u32 %v49, 4294901760
    %1886 = vmatmul.f32.gmra.mxu0 %v1885
    %v1887 = vpop.f32.mrf.mxu0
    %v1888 = vadd.f32 %v1851, %v1887
    %1889 = vdwg.mxu0
    %v1890 = vand.u32 %v148, 4294901760
    %1891 = vmatpush.msra.mxu0 %v1890
    %v1892 = vand.u32 %v147, 4294901760
    %1893 = vmatpush.msra.mxu0 %v1892
    %v1894 = vand.u32 %v146, 4294901760
    %1895 = vmatpush.msra.mxu0 %v1894
    %v1896 = vand.u32 %v145, 4294901760
    %1897 = vmatpush.msra.mxu0 %v1896
    %v1898 = vand.u32 %v144, 4294901760
    %1899 = vmatpush.msra.mxu0 %v1898
    %v1900 = vand.u32 %v143, 4294901760
    %1901 = vmatpush.msra.mxu0 %v1900
    %v1902 = vand.u32 %v142, 4294901760
    %1903 = vmatpush.msra.mxu0 %v1902
    %v1904 = vand.u32 %v141, 4294901760
    %1905 = vmatpush.msra.mxu0 %v1904
    %v1906 = vand.u32 %v140, 4294901760
    %1907 = vmatpush.msra.mxu0 %v1906
    %v1908 = vand.u32 %v139, 4294901760
    %1909 = vmatpush.msra.mxu0 %v1908
    %v1910 = vand.u32 %v138, 4294901760
    %1911 = vmatpush.msra.mxu0 %v1910
    %v1912 = vand.u32 %v137, 4294901760
    %1913 = vmatpush.msra.mxu0 %v1912
    %v1914 = vand.u32 %v136, 4294901760
    %1915 = vmatpush.msra.mxu0 %v1914
    %v1916 = vand.u32 %v135, 4294901760
    %1917 = vmatpush.msra.mxu0 %v1916
    %v1918 = vand.u32 %v134, 4294901760
    %1919 = vmatpush.msra.mxu0 %v1918
    %v1920 = vand.u32 %v133, 4294901760
    %1921 = vmatpush.msra.mxu0 %v1920
    %v1922 = vand.u32 %v50, 4294901760
    %v1923 = vsub.f32 %v50, %v1922
    %v1924 = vand.u32 %v1923, 4294901760
    %v1925 = vsub.f32 %v1923, %v1924
    %v1926 = vand.u32 %v1925, 4294901760
    %1927 = vmatmul.f32.gmra.mxu0 %v1926
    %v1928 = vpop.f32.mrf.mxu0
    %v1929 = vadd.f32 %v1888, %v1928
    %1930 = vdwg.mxu0
    %v1931 = vand.u32 %v148, 4294901760
    %v1932 = vsub.f32 %v148, %v1931
    %v1933 = vand.u32 %v1932, 4294901760
    %v1934 = vsub.f32 %v1932, %v1933
    %v1935 = vand.u32 %v1934, 4294901760
    %1936 = vmatpush.msra.mxu0 %v1935
    %v1937 = vand.u32 %v147, 4294901760
    %v1938 = vsub.f32 %v147, %v1937
    %v1939 = vand.u32 %v1938, 4294901760
    %v1940 = vsub.f32 %v1938, %v1939
    %v1941 = vand.u32 %v1940, 4294901760
    %1942 = vmatpush.msra.mxu0 %v1941
    %v1943 = vand.u32 %v146, 4294901760
    %v1944 = vsub.f32 %v146, %v1943
    %v1945 = vand.u32 %v1944, 4294901760
    %v1946 = vsub.f32 %v1944, %v1945
    %v1947 = vand.u32 %v1946, 4294901760
    %1948 = vmatpush.msra.mxu0 %v1947
    %v1949 = vand.u32 %v145, 4294901760
    %v1950 = vsub.f32 %v145, %v1949
    %v1951 = vand.u32 %v1950, 4294901760
    %v1952 = vsub.f32 %v1950, %v1951
    %v1953 = vand.u32 %v1952, 4294901760
    %1954 = vmatpush.msra.mxu0 %v1953
    %v1955 = vand.u32 %v144, 4294901760
    %v1956 = vsub.f32 %v144, %v1955
    %v1957 = vand.u32 %v1956, 4294901760
    %v1958 = vsub.f32 %v1956, %v1957
    %v1959 = vand.u32 %v1958, 4294901760
    %1960 = vmatpush.msra.mxu0 %v1959
    %v1961 = vand.u32 %v143, 4294901760
    %v1962 = vsub.f32 %v143, %v1961
    %v1963 = vand.u32 %v1962, 4294901760
    %v1964 = vsub.f32 %v1962, %v1963
    %v1965 = vand.u32 %v1964, 4294901760
    %1966 = vmatpush.msra.mxu0 %v1965
    %v1967 = vand.u32 %v142, 4294901760
    %v1968 = vsub.f32 %v142, %v1967
    %v1969 = vand.u32 %v1968, 4294901760
    %v1970 = vsub.f32 %v1968, %v1969
    %v1971 = vand.u32 %v1970, 4294901760
    %1972 = vmatpush.msra.mxu0 %v1971
    %v1973 = vand.u32 %v141, 4294901760
    %v1974 = vsub.f32 %v141, %v1973
    %v1975 = vand.u32 %v1974, 4294901760
    %v1976 = vsub.f32 %v1974, %v1975
    %v1977 = vand.u32 %v1976, 4294901760
    %1978 = vmatpush.msra.mxu0 %v1977
    %v1979 = vand.u32 %v140, 4294901760
    %v1980 = vsub.f32 %v140, %v1979
    %v1981 = vand.u32 %v1980, 4294901760
    %v1982 = vsub.f32 %v1980, %v1981
    %v1983 = vand.u32 %v1982, 4294901760
    %1984 = vmatpush.msra.mxu0 %v1983
    %v1985 = vand.u32 %v139, 4294901760
    %v1986 = vsub.f32 %v139, %v1985
    %v1987 = vand.u32 %v1986, 4294901760
    %v1988 = vsub.f32 %v1986, %v1987
    %v1989 = vand.u32 %v1988, 4294901760
    %1990 = vmatpush.msra.mxu0 %v1989
    %v1991 = vand.u32 %v138, 4294901760
    %v1992 = vsub.f32 %v138, %v1991
    %v1993 = vand.u32 %v1992, 4294901760
    %v1994 = vsub.f32 %v1992, %v1993
    %v1995 = vand.u32 %v1994, 4294901760
    %1996 = vmatpush.msra.mxu0 %v1995
    %v1997 = vand.u32 %v137, 4294901760
    %v1998 = vsub.f32 %v137, %v1997
    %v1999 = vand.u32 %v1998, 4294901760
    %v2000 = vsub.f32 %v1998, %v1999
    %v2001 = vand.u32 %v2000, 4294901760
    %2002 = vmatpush.msra.mxu0 %v2001
    %v2003 = vand.u32 %v136, 4294901760
    %v2004 = vsub.f32 %v136, %v2003
    %v2005 = vand.u32 %v2004, 4294901760
    %v2006 = vsub.f32 %v2004, %v2005
    %v2007 = vand.u32 %v2006, 4294901760
    %2008 = vmatpush.msra.mxu0 %v2007
    %v2009 = vand.u32 %v135, 4294901760
    %v2010 = vsub.f32 %v135, %v2009
    %v2011 = vand.u32 %v2010, 4294901760
    %v2012 = vsub.f32 %v2010, %v2011
    %v2013 = vand.u32 %v2012, 4294901760
    %2014 = vmatpush.msra.mxu0 %v2013
    %v2015 = vand.u32 %v134, 4294901760
    %v2016 = vsub.f32 %v134, %v2015
    %v2017 = vand.u32 %v2016, 4294901760
    %v2018 = vsub.f32 %v2016, %v2017
    %v2019 = vand.u32 %v2018, 4294901760
    %2020 = vmatpush.msra.mxu0 %v2019
    %v2021 = vand.u32 %v133, 4294901760
    %v2022 = vsub.f32 %v133, %v2021
    %v2023 = vand.u32 %v2022, 4294901760
    %v2024 = vsub.f32 %v2022, %v2023
    %v2025 = vand.u32 %v2024, 4294901760
    %2026 = vmatpush.msra.mxu0 %v2025
    %v2027 = vand.u32 %v50, 4294901760
    %2028 = vmatmul.f32.gmra.mxu0 %v2027
    %v2029 = vpop.f32.mrf.mxu0
    %v2030 = vadd.f32 %v1929, %v2029
    %2031 = vdwg.mxu0
    %v2032 = vand.u32 %v148, 4294901760
    %v2033 = vsub.f32 %v148, %v2032
    %2034 = vmatpush.msra.mxu0 %v2033
    %v2035 = vand.u32 %v147, 4294901760
    %v2036 = vsub.f32 %v147, %v2035
    %2037 = vmatpush.msra.mxu0 %v2036
    %v2038 = vand.u32 %v146, 4294901760
    %v2039 = vsub.f32 %v146, %v2038
    %2040 = vmatpush.msra.mxu0 %v2039
    %v2041 = vand.u32 %v145, 4294901760
    %v2042 = vsub.f32 %v145, %v2041
    %2043 = vmatpush.msra.mxu0 %v2042
    %v2044 = vand.u32 %v144, 4294901760
    %v2045 = vsub.f32 %v144, %v2044
    %2046 = vmatpush.msra.mxu0 %v2045
    %v2047 = vand.u32 %v143, 4294901760
    %v2048 = vsub.f32 %v143, %v2047
    %2049 = vmatpush.msra.mxu0 %v2048
    %v2050 = vand.u32 %v142, 4294901760
    %v2051 = vsub.f32 %v142, %v2050
    %2052 = vmatpush.msra.mxu0 %v2051
    %v2053 = vand.u32 %v141, 4294901760
    %v2054 = vsub.f32 %v141, %v2053
    %2055 = vmatpush.msra.mxu0 %v2054
    %v2056 = vand.u32 %v140, 4294901760
    %v2057 = vsub.f32 %v140, %v2056
    %2058 = vmatpush.msra.mxu0 %v2057
    %v2059 = vand.u32 %v139, 4294901760
    %v2060 = vsub.f32 %v139, %v2059
    %2061 = vmatpush.msra.mxu0 %v2060
    %v2062 = vand.u32 %v138, 4294901760
    %v2063 = vsub.f32 %v138, %v2062
    %2064 = vmatpush.msra.mxu0 %v2063
    %v2065 = vand.u32 %v137, 4294901760
    %v2066 = vsub.f32 %v137, %v2065
    %2067 = vmatpush.msra.mxu0 %v2066
    %v2068 = vand.u32 %v136, 4294901760
    %v2069 = vsub.f32 %v136, %v2068
    %2070 = vmatpush.msra.mxu0 %v2069
    %v2071 = vand.u32 %v135, 4294901760
    %v2072 = vsub.f32 %v135, %v2071
    %2073 = vmatpush.msra.mxu0 %v2072
    %v2074 = vand.u32 %v134, 4294901760
    %v2075 = vsub.f32 %v134, %v2074
    %2076 = vmatpush.msra.mxu0 %v2075
    %v2077 = vand.u32 %v133, 4294901760
    %v2078 = vsub.f32 %v133, %v2077
    %2079 = vmatpush.msra.mxu0 %v2078
    %v2080 = vand.u32 %v50, 4294901760
    %v2081 = vsub.f32 %v50, %v2080
    %2082 = vmatmul.f32.gmra.mxu0 %v2081
    %v2083 = vpop.f32.mrf.mxu0
    %v2084 = vadd.f32 %v2030, %v2083
    %2085 = vdwg.mxu0
    %v2086 = vand.u32 %v148, 4294901760
    %2087 = vmatpush.msra.mxu0 %v2086
    %v2088 = vand.u32 %v147, 4294901760
    %2089 = vmatpush.msra.mxu0 %v2088
    %v2090 = vand.u32 %v146, 4294901760
    %2091 = vmatpush.msra.mxu0 %v2090
    %v2092 = vand.u32 %v145, 4294901760
    %2093 = vmatpush.msra.mxu0 %v2092
    %v2094 = vand.u32 %v144, 4294901760
    %2095 = vmatpush.msra.mxu0 %v2094
    %v2096 = vand.u32 %v143, 4294901760
    %2097 = vmatpush.msra.mxu0 %v2096
    %v2098 = vand.u32 %v142, 4294901760
    %2099 = vmatpush.msra.mxu0 %v2098
    %v2100 = vand.u32 %v141, 4294901760
    %2101 = vmatpush.msra.mxu0 %v2100
    %v2102 = vand.u32 %v140, 4294901760
    %2103 = vmatpush.msra.mxu0 %v2102
    %v2104 = vand.u32 %v139, 4294901760
    %2105 = vmatpush.msra.mxu0 %v2104
    %v2106 = vand.u32 %v138, 4294901760
    %2107 = vmatpush.msra.mxu0 %v2106
    %v2108 = vand.u32 %v137, 4294901760
    %2109 = vmatpush.msra.mxu0 %v2108
    %v2110 = vand.u32 %v136, 4294901760
    %2111 = vmatpush.msra.mxu0 %v2110
    %v2112 = vand.u32 %v135, 4294901760
    %2113 = vmatpush.msra.mxu0 %v2112
    %v2114 = vand.u32 %v134, 4294901760
    %2115 = vmatpush.msra.mxu0 %v2114
    %v2116 = vand.u32 %v133, 4294901760
    %2117 = vmatpush.msra.mxu0 %v2116
    %v2118 = vand.u32 %v50, 4294901760
    %v2119 = vsub.f32 %v50, %v2118
    %v2120 = vand.u32 %v2119, 4294901760
    %2121 = vmatmul.f32.gmra.mxu0 %v2120
    %v2122 = vpop.f32.mrf.mxu0
    %v2123 = vadd.f32 %v2084, %v2122
    %2124 = vdwg.mxu0
    %v2125 = vand.u32 %v148, 4294901760
    %v2126 = vsub.f32 %v148, %v2125
    %v2127 = vand.u32 %v2126, 4294901760
    %2128 = vmatpush.msra.mxu0 %v2127
    %v2129 = vand.u32 %v147, 4294901760
    %v2130 = vsub.f32 %v147, %v2129
    %v2131 = vand.u32 %v2130, 4294901760
    %2132 = vmatpush.msra.mxu0 %v2131
    %v2133 = vand.u32 %v146, 4294901760
    %v2134 = vsub.f32 %v146, %v2133
    %v2135 = vand.u32 %v2134, 4294901760
    %2136 = vmatpush.msra.mxu0 %v2135
    %v2137 = vand.u32 %v145, 4294901760
    %v2138 = vsub.f32 %v145, %v2137
    %v2139 = vand.u32 %v2138, 4294901760
    %2140 = vmatpush.msra.mxu0 %v2139
    %v2141 = vand.u32 %v144, 4294901760
    %v2142 = vsub.f32 %v144, %v2141
    %v2143 = vand.u32 %v2142, 4294901760
    %2144 = vmatpush.msra.mxu0 %v2143
    %v2145 = vand.u32 %v143, 4294901760
    %v2146 = vsub.f32 %v143, %v2145
    %v2147 = vand.u32 %v2146, 4294901760
    %2148 = vmatpush.msra.mxu0 %v2147
    %v2149 = vand.u32 %v142, 4294901760
    %v2150 = vsub.f32 %v142, %v2149
    %v2151 = vand.u32 %v2150, 4294901760
    %2152 = vmatpush.msra.mxu0 %v2151
    %v2153 = vand.u32 %v141, 4294901760
    %v2154 = vsub.f32 %v141, %v2153
    %v2155 = vand.u32 %v2154, 4294901760
    %2156 = vmatpush.msra.mxu0 %v2155
    %v2157 = vand.u32 %v140, 4294901760
    %v2158 = vsub.f32 %v140, %v2157
    %v2159 = vand.u32 %v2158, 4294901760
    %2160 = vmatpush.msra.mxu0 %v2159
    %v2161 = vand.u32 %v139, 4294901760
    %v2162 = vsub.f32 %v139, %v2161
    %v2163 = vand.u32 %v2162, 4294901760
    %2164 = vmatpush.msra.mxu0 %v2163
    %v2165 = vand.u32 %v138, 4294901760
    %v2166 = vsub.f32 %v138, %v2165
    %v2167 = vand.u32 %v2166, 4294901760
    %2168 = vmatpush.msra.mxu0 %v2167
    %v2169 = vand.u32 %v137, 4294901760
    %v2170 = vsub.f32 %v137, %v2169
    %v2171 = vand.u32 %v2170, 4294901760
    %2172 = vmatpush.msra.mxu0 %v2171
    %v2173 = vand.u32 %v136, 4294901760
    %v2174 = vsub.f32 %v136, %v2173
    %v2175 = vand.u32 %v2174, 4294901760
    %2176 = vmatpush.msra.mxu0 %v2175
    %v2177 = vand.u32 %v135, 4294901760
    %v2178 = vsub.f32 %v135, %v2177
    %v2179 = vand.u32 %v2178, 4294901760
    %2180 = vmatpush.msra.mxu0 %v2179
    %v2181 = vand.u32 %v134, 4294901760
    %v2182 = vsub.f32 %v134, %v2181
    %v2183 = vand.u32 %v2182, 4294901760
    %2184 = vmatpush.msra.mxu0 %v2183
    %v2185 = vand.u32 %v133, 4294901760
    %v2186 = vsub.f32 %v133, %v2185
    %v2187 = vand.u32 %v2186, 4294901760
    %2188 = vmatpush.msra.mxu0 %v2187
    %v2189 = vand.u32 %v50, 4294901760
    %2190 = vmatmul.f32.gmra.mxu0 %v2189
    %v2191 = vpop.f32.mrf.mxu0
    %v2192 = vadd.f32 %v2123, %v2191
    %2193 = vdwg.mxu0
    %v2194 = vand.u32 %v148, 4294901760
    %2195 = vmatpush.msra.mxu0 %v2194
    %v2196 = vand.u32 %v147, 4294901760
    %2197 = vmatpush.msra.mxu0 %v2196
    %v2198 = vand.u32 %v146, 4294901760
    %2199 = vmatpush.msra.mxu0 %v2198
    %v2200 = vand.u32 %v145, 4294901760
    %2201 = vmatpush.msra.mxu0 %v2200
    %v2202 = vand.u32 %v144, 4294901760
    %2203 = vmatpush.msra.mxu0 %v2202
    %v2204 = vand.u32 %v143, 4294901760
    %2205 = vmatpush.msra.mxu0 %v2204
    %v2206 = vand.u32 %v142, 4294901760
    %2207 = vmatpush.msra.mxu0 %v2206
    %v2208 = vand.u32 %v141, 4294901760
    %2209 = vmatpush.msra.mxu0 %v2208
    %v2210 = vand.u32 %v140, 4294901760
    %2211 = vmatpush.msra.mxu0 %v2210
    %v2212 = vand.u32 %v139, 4294901760
    %2213 = vmatpush.msra.mxu0 %v2212
    %v2214 = vand.u32 %v138, 4294901760
    %2215 = vmatpush.msra.mxu0 %v2214
    %v2216 = vand.u32 %v137, 4294901760
    %2217 = vmatpush.msra.mxu0 %v2216
    %v2218 = vand.u32 %v136, 4294901760
    %2219 = vmatpush.msra.mxu0 %v2218
    %v2220 = vand.u32 %v135, 4294901760
    %2221 = vmatpush.msra.mxu0 %v2220
    %v2222 = vand.u32 %v134, 4294901760
    %2223 = vmatpush.msra.mxu0 %v2222
    %v2224 = vand.u32 %v133, 4294901760
    %2225 = vmatpush.msra.mxu0 %v2224
    %v2226 = vand.u32 %v50, 4294901760
    %2227 = vmatmul.f32.gmra.mxu0 %v2226
    %v2228 = vpop.f32.mrf.mxu0
    %v2229 = vadd.f32 %v2192, %v2228
    %2230 = vdwg.mxu0
    %v2231 = vand.u32 %v164, 4294901760
    %2232 = vmatpush.msra.mxu0 %v2231
    %v2233 = vand.u32 %v163, 4294901760
    %2234 = vmatpush.msra.mxu0 %v2233
    %v2235 = vand.u32 %v162, 4294901760
    %2236 = vmatpush.msra.mxu0 %v2235
    %v2237 = vand.u32 %v161, 4294901760
    %2238 = vmatpush.msra.mxu0 %v2237
    %v2239 = vand.u32 %v160, 4294901760
    %2240 = vmatpush.msra.mxu0 %v2239
    %v2241 = vand.u32 %v159, 4294901760
    %2242 = vmatpush.msra.mxu0 %v2241
    %v2243 = vand.u32 %v158, 4294901760
    %2244 = vmatpush.msra.mxu0 %v2243
    %v2245 = vand.u32 %v157, 4294901760
    %2246 = vmatpush.msra.mxu0 %v2245
    %v2247 = vand.u32 %v156, 4294901760
    %2248 = vmatpush.msra.mxu0 %v2247
    %v2249 = vand.u32 %v155, 4294901760
    %2250 = vmatpush.msra.mxu0 %v2249
    %v2251 = vand.u32 %v154, 4294901760
    %2252 = vmatpush.msra.mxu0 %v2251
    %v2253 = vand.u32 %v153, 4294901760
    %2254 = vmatpush.msra.mxu0 %v2253
    %v2255 = vand.u32 %v152, 4294901760
    %2256 = vmatpush.msra.mxu0 %v2255
    %v2257 = vand.u32 %v151, 4294901760
    %2258 = vmatpush.msra.mxu0 %v2257
    %v2259 = vand.u32 %v150, 4294901760
    %2260 = vmatpush.msra.mxu0 %v2259
    %v2261 = vand.u32 %v149, 4294901760
    %2262 = vmatpush.msra.mxu0 %v2261
    %v2263 = vand.u32 %v51, 4294901760
    %v2264 = vsub.f32 %v51, %v2263
    %v2265 = vand.u32 %v2264, 4294901760
    %v2266 = vsub.f32 %v2264, %v2265
    %v2267 = vand.u32 %v2266, 4294901760
    %2268 = vmatmul.f32.gmra.mxu0 %v2267
    %v2269 = vpop.f32.mrf.mxu0
    %v2270 = vadd.f32 %v2229, %v2269
    %2271 = vdwg.mxu0
    %v2272 = vand.u32 %v164, 4294901760
    %v2273 = vsub.f32 %v164, %v2272
    %v2274 = vand.u32 %v2273, 4294901760
    %v2275 = vsub.f32 %v2273, %v2274
    %v2276 = vand.u32 %v2275, 4294901760
    %2277 = vmatpush.msra.mxu0 %v2276
    %v2278 = vand.u32 %v163, 4294901760
    %v2279 = vsub.f32 %v163, %v2278
    %v2280 = vand.u32 %v2279, 4294901760
    %v2281 = vsub.f32 %v2279, %v2280
    %v2282 = vand.u32 %v2281, 4294901760
    %2283 = vmatpush.msra.mxu0 %v2282
    %v2284 = vand.u32 %v162, 4294901760
    %v2285 = vsub.f32 %v162, %v2284
    %v2286 = vand.u32 %v2285, 4294901760
    %v2287 = vsub.f32 %v2285, %v2286
    %v2288 = vand.u32 %v2287, 4294901760
    %2289 = vmatpush.msra.mxu0 %v2288
    %v2290 = vand.u32 %v161, 4294901760
    %v2291 = vsub.f32 %v161, %v2290
    %v2292 = vand.u32 %v2291, 4294901760
    %v2293 = vsub.f32 %v2291, %v2292
    %v2294 = vand.u32 %v2293, 4294901760
    %2295 = vmatpush.msra.mxu0 %v2294
    %v2296 = vand.u32 %v160, 4294901760
    %v2297 = vsub.f32 %v160, %v2296
    %v2298 = vand.u32 %v2297, 4294901760
    %v2299 = vsub.f32 %v2297, %v2298
    %v2300 = vand.u32 %v2299, 4294901760
    %2301 = vmatpush.msra.mxu0 %v2300
    %v2302 = vand.u32 %v159, 4294901760
    %v2303 = vsub.f32 %v159, %v2302
    %v2304 = vand.u32 %v2303, 4294901760
    %v2305 = vsub.f32 %v2303, %v2304
    %v2306 = vand.u32 %v2305, 4294901760
    %2307 = vmatpush.msra.mxu0 %v2306
    %v2308 = vand.u32 %v158, 4294901760
    %v2309 = vsub.f32 %v158, %v2308
    %v2310 = vand.u32 %v2309, 4294901760
    %v2311 = vsub.f32 %v2309, %v2310
    %v2312 = vand.u32 %v2311, 4294901760
    %2313 = vmatpush.msra.mxu0 %v2312
    %v2314 = vand.u32 %v157, 4294901760
    %v2315 = vsub.f32 %v157, %v2314
    %v2316 = vand.u32 %v2315, 4294901760
    %v2317 = vsub.f32 %v2315, %v2316
    %v2318 = vand.u32 %v2317, 4294901760
    %2319 = vmatpush.msra.mxu0 %v2318
    %v2320 = vand.u32 %v156, 4294901760
    %v2321 = vsub.f32 %v156, %v2320
    %v2322 = vand.u32 %v2321, 4294901760
    %v2323 = vsub.f32 %v2321, %v2322
    %v2324 = vand.u32 %v2323, 4294901760
    %2325 = vmatpush.msra.mxu0 %v2324
    %v2326 = vand.u32 %v155, 4294901760
    %v2327 = vsub.f32 %v155, %v2326
    %v2328 = vand.u32 %v2327, 4294901760
    %v2329 = vsub.f32 %v2327, %v2328
    %v2330 = vand.u32 %v2329, 4294901760
    %2331 = vmatpush.msra.mxu0 %v2330
    %v2332 = vand.u32 %v154, 4294901760
    %v2333 = vsub.f32 %v154, %v2332
    %v2334 = vand.u32 %v2333, 4294901760
    %v2335 = vsub.f32 %v2333, %v2334
    %v2336 = vand.u32 %v2335, 4294901760
    %2337 = vmatpush.msra.mxu0 %v2336
    %v2338 = vand.u32 %v153, 4294901760
    %v2339 = vsub.f32 %v153, %v2338
    %v2340 = vand.u32 %v2339, 4294901760
    %v2341 = vsub.f32 %v2339, %v2340
    %v2342 = vand.u32 %v2341, 4294901760
    %2343 = vmatpush.msra.mxu0 %v2342
    %v2344 = vand.u32 %v152, 4294901760
    %v2345 = vsub.f32 %v152, %v2344
    %v2346 = vand.u32 %v2345, 4294901760
    %v2347 = vsub.f32 %v2345, %v2346
    %v2348 = vand.u32 %v2347, 4294901760
    %2349 = vmatpush.msra.mxu0 %v2348
    %v2350 = vand.u32 %v151, 4294901760
    %v2351 = vsub.f32 %v151, %v2350
    %v2352 = vand.u32 %v2351, 4294901760
    %v2353 = vsub.f32 %v2351, %v2352
    %v2354 = vand.u32 %v2353, 4294901760
    %2355 = vmatpush.msra.mxu0 %v2354
    %v2356 = vand.u32 %v150, 4294901760
    %v2357 = vsub.f32 %v150, %v2356
    %v2358 = vand.u32 %v2357, 4294901760
    %v2359 = vsub.f32 %v2357, %v2358
    %v2360 = vand.u32 %v2359, 4294901760
    %2361 = vmatpush.msra.mxu0 %v2360
    %v2362 = vand.u32 %v149, 4294901760
    %v2363 = vsub.f32 %v149, %v2362
    %v2364 = vand.u32 %v2363, 4294901760
    %v2365 = vsub.f32 %v2363, %v2364
    %v2366 = vand.u32 %v2365, 4294901760
    %2367 = vmatpush.msra.mxu0 %v2366
    %v2368 = vand.u32 %v51, 4294901760
    %2369 = vmatmul.f32.gmra.mxu0 %v2368
    %v2370 = vpop.f32.mrf.mxu0
    %v2371 = vadd.f32 %v2270, %v2370
    %2372 = vdwg.mxu0
    %v2373 = vand.u32 %v164, 4294901760
    %v2374 = vsub.f32 %v164, %v2373
    %2375 = vmatpush.msra.mxu0 %v2374
    %v2376 = vand.u32 %v163, 4294901760
    %v2377 = vsub.f32 %v163, %v2376
    %2378 = vmatpush.msra.mxu0 %v2377
    %v2379 = vand.u32 %v162, 4294901760
    %v2380 = vsub.f32 %v162, %v2379
    %2381 = vmatpush.msra.mxu0 %v2380
    %v2382 = vand.u32 %v161, 4294901760
    %v2383 = vsub.f32 %v161, %v2382
    %2384 = vmatpush.msra.mxu0 %v2383
    %v2385 = vand.u32 %v160, 4294901760
    %v2386 = vsub.f32 %v160, %v2385
    %2387 = vmatpush.msra.mxu0 %v2386
    %v2388 = vand.u32 %v159, 4294901760
    %v2389 = vsub.f32 %v159, %v2388
    %2390 = vmatpush.msra.mxu0 %v2389
    %v2391 = vand.u32 %v158, 4294901760
    %v2392 = vsub.f32 %v158, %v2391
    %2393 = vmatpush.msra.mxu0 %v2392
    %v2394 = vand.u32 %v157, 4294901760
    %v2395 = vsub.f32 %v157, %v2394
    %2396 = vmatpush.msra.mxu0 %v2395
    %v2397 = vand.u32 %v156, 4294901760
    %v2398 = vsub.f32 %v156, %v2397
    %2399 = vmatpush.msra.mxu0 %v2398
    %v2400 = vand.u32 %v155, 4294901760
    %v2401 = vsub.f32 %v155, %v2400
    %2402 = vmatpush.msra.mxu0 %v2401
    %v2403 = vand.u32 %v154, 4294901760
    %v2404 = vsub.f32 %v154, %v2403
    %2405 = vmatpush.msra.mxu0 %v2404
    %v2406 = vand.u32 %v153, 4294901760
    %v2407 = vsub.f32 %v153, %v2406
    %2408 = vmatpush.msra.mxu0 %v2407
    %v2409 = vand.u32 %v152, 4294901760
    %v2410 = vsub.f32 %v152, %v2409
    %2411 = vmatpush.msra.mxu0 %v2410
    %v2412 = vand.u32 %v151, 4294901760
    %v2413 = vsub.f32 %v151, %v2412
    %2414 = vmatpush.msra.mxu0 %v2413
    %v2415 = vand.u32 %v150, 4294901760
    %v2416 = vsub.f32 %v150, %v2415
    %2417 = vmatpush.msra.mxu0 %v2416
    %v2418 = vand.u32 %v149, 4294901760
    %v2419 = vsub.f32 %v149, %v2418
    %2420 = vmatpush.msra.mxu0 %v2419
    %v2421 = vand.u32 %v51, 4294901760
    %v2422 = vsub.f32 %v51, %v2421
    %2423 = vmatmul.f32.gmra.mxu0 %v2422
    %v2424 = vpop.f32.mrf.mxu0
    %v2425 = vadd.f32 %v2371, %v2424
    %2426 = vdwg.mxu0
    %v2427 = vand.u32 %v164, 4294901760
    %2428 = vmatpush.msra.mxu0 %v2427
    %v2429 = vand.u32 %v163, 4294901760
    %2430 = vmatpush.msra.mxu0 %v2429
    %v2431 = vand.u32 %v162, 4294901760
    %2432 = vmatpush.msra.mxu0 %v2431
    %v2433 = vand.u32 %v161, 4294901760
    %2434 = vmatpush.msra.mxu0 %v2433
    %v2435 = vand.u32 %v160, 4294901760
    %2436 = vmatpush.msra.mxu0 %v2435
    %v2437 = vand.u32 %v159, 4294901760
    %2438 = vmatpush.msra.mxu0 %v2437
    %v2439 = vand.u32 %v158, 4294901760
    %2440 = vmatpush.msra.mxu0 %v2439
    %v2441 = vand.u32 %v157, 4294901760
    %2442 = vmatpush.msra.mxu0 %v2441
    %v2443 = vand.u32 %v156, 4294901760
    %2444 = vmatpush.msra.mxu0 %v2443
    %v2445 = vand.u32 %v155, 4294901760
    %2446 = vmatpush.msra.mxu0 %v2445
    %v2447 = vand.u32 %v154, 4294901760
    %2448 = vmatpush.msra.mxu0 %v2447
    %v2449 = vand.u32 %v153, 4294901760
    %2450 = vmatpush.msra.mxu0 %v2449
    %v2451 = vand.u32 %v152, 4294901760
    %2452 = vmatpush.msra.mxu0 %v2451
    %v2453 = vand.u32 %v151, 4294901760
    %2454 = vmatpush.msra.mxu0 %v2453
    %v2455 = vand.u32 %v150, 4294901760
    %2456 = vmatpush.msra.mxu0 %v2455
    %v2457 = vand.u32 %v149, 4294901760
    %2458 = vmatpush.msra.mxu0 %v2457
    %v2459 = vand.u32 %v51, 4294901760
    %v2460 = vsub.f32 %v51, %v2459
    %v2461 = vand.u32 %v2460, 4294901760
    %2462 = vmatmul.f32.gmra.mxu0 %v2461
    %v2463 = vpop.f32.mrf.mxu0
    %v2464 = vadd.f32 %v2425, %v2463
    %2465 = vdwg.mxu0
    %v2466 = vand.u32 %v164, 4294901760
    %v2467 = vsub.f32 %v164, %v2466
    %v2468 = vand.u32 %v2467, 4294901760
    %2469 = vmatpush.msra.mxu0 %v2468
    %v2470 = vand.u32 %v163, 4294901760
    %v2471 = vsub.f32 %v163, %v2470
    %v2472 = vand.u32 %v2471, 4294901760
    %2473 = vmatpush.msra.mxu0 %v2472
    %v2474 = vand.u32 %v162, 4294901760
    %v2475 = vsub.f32 %v162, %v2474
    %v2476 = vand.u32 %v2475, 4294901760
    %2477 = vmatpush.msra.mxu0 %v2476
    %v2478 = vand.u32 %v161, 4294901760
    %v2479 = vsub.f32 %v161, %v2478
    %v2480 = vand.u32 %v2479, 4294901760
    %2481 = vmatpush.msra.mxu0 %v2480
    %v2482 = vand.u32 %v160, 4294901760
    %v2483 = vsub.f32 %v160, %v2482
    %v2484 = vand.u32 %v2483, 4294901760
    %2485 = vmatpush.msra.mxu0 %v2484
    %v2486 = vand.u32 %v159, 4294901760
    %v2487 = vsub.f32 %v159, %v2486
    %v2488 = vand.u32 %v2487, 4294901760
    %2489 = vmatpush.msra.mxu0 %v2488
    %v2490 = vand.u32 %v158, 4294901760
    %v2491 = vsub.f32 %v158, %v2490
    %v2492 = vand.u32 %v2491, 4294901760
    %2493 = vmatpush.msra.mxu0 %v2492
    %v2494 = vand.u32 %v157, 4294901760
    %v2495 = vsub.f32 %v157, %v2494
    %v2496 = vand.u32 %v2495, 4294901760
    %2497 = vmatpush.msra.mxu0 %v2496
    %v2498 = vand.u32 %v156, 4294901760
    %v2499 = vsub.f32 %v156, %v2498
    %v2500 = vand.u32 %v2499, 4294901760
    %2501 = vmatpush.msra.mxu0 %v2500
    %v2502 = vand.u32 %v155, 4294901760
    %v2503 = vsub.f32 %v155, %v2502
    %v2504 = vand.u32 %v2503, 4294901760
    %2505 = vmatpush.msra.mxu0 %v2504
    %v2506 = vand.u32 %v154, 4294901760
    %v2507 = vsub.f32 %v154, %v2506
    %v2508 = vand.u32 %v2507, 4294901760
    %2509 = vmatpush.msra.mxu0 %v2508
    %v2510 = vand.u32 %v153, 4294901760
    %v2511 = vsub.f32 %v153, %v2510
    %v2512 = vand.u32 %v2511, 4294901760
    %2513 = vmatpush.msra.mxu0 %v2512
    %v2514 = vand.u32 %v152, 4294901760
    %v2515 = vsub.f32 %v152, %v2514
    %v2516 = vand.u32 %v2515, 4294901760
    %2517 = vmatpush.msra.mxu0 %v2516
    %v2518 = vand.u32 %v151, 4294901760
    %v2519 = vsub.f32 %v151, %v2518
    %v2520 = vand.u32 %v2519, 4294901760
    %2521 = vmatpush.msra.mxu0 %v2520
    %v2522 = vand.u32 %v150, 4294901760
    %v2523 = vsub.f32 %v150, %v2522
    %v2524 = vand.u32 %v2523, 4294901760
    %2525 = vmatpush.msra.mxu0 %v2524
    %v2526 = vand.u32 %v149, 4294901760
    %v2527 = vsub.f32 %v149, %v2526
    %v2528 = vand.u32 %v2527, 4294901760
    %2529 = vmatpush.msra.mxu0 %v2528
    %v2530 = vand.u32 %v51, 4294901760
    %2531 = vmatmul.f32.gmra.mxu0 %v2530
    %v2532 = vpop.f32.mrf.mxu0
    %v2533 = vadd.f32 %v2464, %v2532
    %2534 = vdwg.mxu0
    %v2535 = vand.u32 %v164, 4294901760
    %2536 = vmatpush.msra.mxu0 %v2535
    %v2537 = vand.u32 %v163, 4294901760
    %2538 = vmatpush.msra.mxu0 %v2537
    %v2539 = vand.u32 %v162, 4294901760
    %2540 = vmatpush.msra.mxu0 %v2539
    %v2541 = vand.u32 %v161, 4294901760
    %2542 = vmatpush.msra.mxu0 %v2541
    %v2543 = vand.u32 %v160, 4294901760
    %2544 = vmatpush.msra.mxu0 %v2543
    %v2545 = vand.u32 %v159, 4294901760
    %2546 = vmatpush.msra.mxu0 %v2545
    %v2547 = vand.u32 %v158, 4294901760
    %2548 = vmatpush.msra.mxu0 %v2547
    %v2549 = vand.u32 %v157, 4294901760
    %2550 = vmatpush.msra.mxu0 %v2549
    %v2551 = vand.u32 %v156, 4294901760
    %2552 = vmatpush.msra.mxu0 %v2551
    %v2553 = vand.u32 %v155, 4294901760
    %2554 = vmatpush.msra.mxu0 %v2553
    %v2555 = vand.u32 %v154, 4294901760
    %2556 = vmatpush.msra.mxu0 %v2555
    %v2557 = vand.u32 %v153, 4294901760
    %2558 = vmatpush.msra.mxu0 %v2557
    %v2559 = vand.u32 %v152, 4294901760
    %2560 = vmatpush.msra.mxu0 %v2559
    %v2561 = vand.u32 %v151, 4294901760
    %2562 = vmatpush.msra.mxu0 %v2561
    %v2563 = vand.u32 %v150, 4294901760
    %2564 = vmatpush.msra.mxu0 %v2563
    %v2565 = vand.u32 %v149, 4294901760
    %2566 = vmatpush.msra.mxu0 %v2565
    %v2567 = vand.u32 %v51, 4294901760
    %2568 = vmatmul.f32.gmra.mxu0 %v2567
    %v2569 = vpop.f32.mrf.mxu0
    %v2570 = vadd.f32 %v2533, %v2569
    %2571 = vdwg.mxu0
    %v2572 = vand.u32 %v180, 4294901760
    %2573 = vmatpush.msra.mxu0 %v2572
    %v2574 = vand.u32 %v179, 4294901760
    %2575 = vmatpush.msra.mxu0 %v2574
    %v2576 = vand.u32 %v178, 4294901760
    %2577 = vmatpush.msra.mxu0 %v2576
    %v2578 = vand.u32 %v177, 4294901760
    %2579 = vmatpush.msra.mxu0 %v2578
    %v2580 = vand.u32 %v176, 4294901760
    %2581 = vmatpush.msra.mxu0 %v2580
    %v2582 = vand.u32 %v175, 4294901760
    %2583 = vmatpush.msra.mxu0 %v2582
    %v2584 = vand.u32 %v174, 4294901760
    %2585 = vmatpush.msra.mxu0 %v2584
    %v2586 = vand.u32 %v173, 4294901760
    %2587 = vmatpush.msra.mxu0 %v2586
    %v2588 = vand.u32 %v172, 4294901760
    %2589 = vmatpush.msra.mxu0 %v2588
    %v2590 = vand.u32 %v171, 4294901760
    %2591 = vmatpush.msra.mxu0 %v2590
    %v2592 = vand.u32 %v170, 4294901760
    %2593 = vmatpush.msra.mxu0 %v2592
    %v2594 = vand.u32 %v169, 4294901760
    %2595 = vmatpush.msra.mxu0 %v2594
    %v2596 = vand.u32 %v168, 4294901760
    %2597 = vmatpush.msra.mxu0 %v2596
    %v2598 = vand.u32 %v167, 4294901760
    %2599 = vmatpush.msra.mxu0 %v2598
    %v2600 = vand.u32 %v166, 4294901760
    %2601 = vmatpush.msra.mxu0 %v2600
    %v2602 = vand.u32 %v165, 4294901760
    %2603 = vmatpush.msra.mxu0 %v2602
    %v2604 = vand.u32 %v52, 4294901760
    %v2605 = vsub.f32 %v52, %v2604
    %v2606 = vand.u32 %v2605, 4294901760
    %v2607 = vsub.f32 %v2605, %v2606
    %v2608 = vand.u32 %v2607, 4294901760
    %2609 = vmatmul.f32.gmra.mxu0 %v2608
    %v2610 = vpop.f32.mrf.mxu0
    %v2611 = vadd.f32 %v2570, %v2610
    %2612 = vdwg.mxu0
    %v2613 = vand.u32 %v180, 4294901760
    %v2614 = vsub.f32 %v180, %v2613
    %v2615 = vand.u32 %v2614, 4294901760
    %v2616 = vsub.f32 %v2614, %v2615
    %v2617 = vand.u32 %v2616, 4294901760
    %2618 = vmatpush.msra.mxu0 %v2617
    %v2619 = vand.u32 %v179, 4294901760
    %v2620 = vsub.f32 %v179, %v2619
    %v2621 = vand.u32 %v2620, 4294901760
    %v2622 = vsub.f32 %v2620, %v2621
    %v2623 = vand.u32 %v2622, 4294901760
    %2624 = vmatpush.msra.mxu0 %v2623
    %v2625 = vand.u32 %v178, 4294901760
    %v2626 = vsub.f32 %v178, %v2625
    %v2627 = vand.u32 %v2626, 4294901760
    %v2628 = vsub.f32 %v2626, %v2627
    %v2629 = vand.u32 %v2628, 4294901760
    %2630 = vmatpush.msra.mxu0 %v2629
    %v2631 = vand.u32 %v177, 4294901760
    %v2632 = vsub.f32 %v177, %v2631
    %v2633 = vand.u32 %v2632, 4294901760
    %v2634 = vsub.f32 %v2632, %v2633
    %v2635 = vand.u32 %v2634, 4294901760
    %2636 = vmatpush.msra.mxu0 %v2635
    %v2637 = vand.u32 %v176, 4294901760
    %v2638 = vsub.f32 %v176, %v2637
    %v2639 = vand.u32 %v2638, 4294901760
    %v2640 = vsub.f32 %v2638, %v2639
    %v2641 = vand.u32 %v2640, 4294901760
    %2642 = vmatpush.msra.mxu0 %v2641
    %v2643 = vand.u32 %v175, 4294901760
    %v2644 = vsub.f32 %v175, %v2643
    %v2645 = vand.u32 %v2644, 4294901760
    %v2646 = vsub.f32 %v2644, %v2645
    %v2647 = vand.u32 %v2646, 4294901760
    %2648 = vmatpush.msra.mxu0 %v2647
    %v2649 = vand.u32 %v174, 4294901760
    %v2650 = vsub.f32 %v174, %v2649
    %v2651 = vand.u32 %v2650, 4294901760
    %v2652 = vsub.f32 %v2650, %v2651
    %v2653 = vand.u32 %v2652, 4294901760
    %2654 = vmatpush.msra.mxu0 %v2653
    %v2655 = vand.u32 %v173, 4294901760
    %v2656 = vsub.f32 %v173, %v2655
    %v2657 = vand.u32 %v2656, 4294901760
    %v2658 = vsub.f32 %v2656, %v2657
    %v2659 = vand.u32 %v2658, 4294901760
    %2660 = vmatpush.msra.mxu0 %v2659
    %v2661 = vand.u32 %v172, 4294901760
    %v2662 = vsub.f32 %v172, %v2661
    %v2663 = vand.u32 %v2662, 4294901760
    %v2664 = vsub.f32 %v2662, %v2663
    %v2665 = vand.u32 %v2664, 4294901760
    %2666 = vmatpush.msra.mxu0 %v2665
    %v2667 = vand.u32 %v171, 4294901760
    %v2668 = vsub.f32 %v171, %v2667
    %v2669 = vand.u32 %v2668, 4294901760
    %v2670 = vsub.f32 %v2668, %v2669
    %v2671 = vand.u32 %v2670, 4294901760
    %2672 = vmatpush.msra.mxu0 %v2671
    %v2673 = vand.u32 %v170, 4294901760
    %v2674 = vsub.f32 %v170, %v2673
    %v2675 = vand.u32 %v2674, 4294901760
    %v2676 = vsub.f32 %v2674, %v2675
    %v2677 = vand.u32 %v2676, 4294901760
    %2678 = vmatpush.msra.mxu0 %v2677
    %v2679 = vand.u32 %v169, 4294901760
    %v2680 = vsub.f32 %v169, %v2679
    %v2681 = vand.u32 %v2680, 4294901760
    %v2682 = vsub.f32 %v2680, %v2681
    %v2683 = vand.u32 %v2682, 4294901760
    %2684 = vmatpush.msra.mxu0 %v2683
    %v2685 = vand.u32 %v168, 4294901760
    %v2686 = vsub.f32 %v168, %v2685
    %v2687 = vand.u32 %v2686, 4294901760
    %v2688 = vsub.f32 %v2686, %v2687
    %v2689 = vand.u32 %v2688, 4294901760
    %2690 = vmatpush.msra.mxu0 %v2689
    %v2691 = vand.u32 %v167, 4294901760
    %v2692 = vsub.f32 %v167, %v2691
    %v2693 = vand.u32 %v2692, 4294901760
    %v2694 = vsub.f32 %v2692, %v2693
    %v2695 = vand.u32 %v2694, 4294901760
    %2696 = vmatpush.msra.mxu0 %v2695
    %v2697 = vand.u32 %v166, 4294901760
    %v2698 = vsub.f32 %v166, %v2697
    %v2699 = vand.u32 %v2698, 4294901760
    %v2700 = vsub.f32 %v2698, %v2699
    %v2701 = vand.u32 %v2700, 4294901760
    %2702 = vmatpush.msra.mxu0 %v2701
    %v2703 = vand.u32 %v165, 4294901760
    %v2704 = vsub.f32 %v165, %v2703
    %v2705 = vand.u32 %v2704, 4294901760
    %v2706 = vsub.f32 %v2704, %v2705
    %v2707 = vand.u32 %v2706, 4294901760
    %2708 = vmatpush.msra.mxu0 %v2707
    %v2709 = vand.u32 %v52, 4294901760
    %2710 = vmatmul.f32.gmra.mxu0 %v2709
    %v2711 = vpop.f32.mrf.mxu0
    %v2712 = vadd.f32 %v2611, %v2711
    %2713 = vdwg.mxu0
    %v2714 = vand.u32 %v180, 4294901760
    %v2715 = vsub.f32 %v180, %v2714
    %2716 = vmatpush.msra.mxu0 %v2715
    %v2717 = vand.u32 %v179, 4294901760
    %v2718 = vsub.f32 %v179, %v2717
    %2719 = vmatpush.msra.mxu0 %v2718
    %v2720 = vand.u32 %v178, 4294901760
    %v2721 = vsub.f32 %v178, %v2720
    %2722 = vmatpush.msra.mxu0 %v2721
    %v2723 = vand.u32 %v177, 4294901760
    %v2724 = vsub.f32 %v177, %v2723
    %2725 = vmatpush.msra.mxu0 %v2724
    %v2726 = vand.u32 %v176, 4294901760
    %v2727 = vsub.f32 %v176, %v2726
    %2728 = vmatpush.msra.mxu0 %v2727
    %v2729 = vand.u32 %v175, 4294901760
    %v2730 = vsub.f32 %v175, %v2729
    %2731 = vmatpush.msra.mxu0 %v2730
    %v2732 = vand.u32 %v174, 4294901760
    %v2733 = vsub.f32 %v174, %v2732
    %2734 = vmatpush.msra.mxu0 %v2733
    %v2735 = vand.u32 %v173, 4294901760
    %v2736 = vsub.f32 %v173, %v2735
    %2737 = vmatpush.msra.mxu0 %v2736
    %v2738 = vand.u32 %v172, 4294901760
    %v2739 = vsub.f32 %v172, %v2738
    %2740 = vmatpush.msra.mxu0 %v2739
    %v2741 = vand.u32 %v171, 4294901760
    %v2742 = vsub.f32 %v171, %v2741
    %2743 = vmatpush.msra.mxu0 %v2742
    %v2744 = vand.u32 %v170, 4294901760
    %v2745 = vsub.f32 %v170, %v2744
    %2746 = vmatpush.msra.mxu0 %v2745
    %v2747 = vand.u32 %v169, 4294901760
    %v2748 = vsub.f32 %v169, %v2747
    %2749 = vmatpush.msra.mxu0 %v2748
    %v2750 = vand.u32 %v168, 4294901760
    %v2751 = vsub.f32 %v168, %v2750
    %2752 = vmatpush.msra.mxu0 %v2751
    %v2753 = vand.u32 %v167, 4294901760
    %v2754 = vsub.f32 %v167, %v2753
    %2755 = vmatpush.msra.mxu0 %v2754
    %v2756 = vand.u32 %v166, 4294901760
    %v2757 = vsub.f32 %v166, %v2756
    %2758 = vmatpush.msra.mxu0 %v2757
    %v2759 = vand.u32 %v165, 4294901760
    %v2760 = vsub.f32 %v165, %v2759
    %2761 = vmatpush.msra.mxu0 %v2760
    %v2762 = vand.u32 %v52, 4294901760
    %v2763 = vsub.f32 %v52, %v2762
    %2764 = vmatmul.f32.gmra.mxu0 %v2763
    %v2765 = vpop.f32.mrf.mxu0
    %v2766 = vadd.f32 %v2712, %v2765
    %2767 = vdwg.mxu0
    %v2768 = vand.u32 %v180, 4294901760
    %2769 = vmatpush.msra.mxu0 %v2768
    %v2770 = vand.u32 %v179, 4294901760
    %2771 = vmatpush.msra.mxu0 %v2770
    %v2772 = vand.u32 %v178, 4294901760
    %2773 = vmatpush.msra.mxu0 %v2772
    %v2774 = vand.u32 %v177, 4294901760
    %2775 = vmatpush.msra.mxu0 %v2774
    %v2776 = vand.u32 %v176, 4294901760
    %2777 = vmatpush.msra.mxu0 %v2776
    %v2778 = vand.u32 %v175, 4294901760
    %2779 = vmatpush.msra.mxu0 %v2778
    %v2780 = vand.u32 %v174, 4294901760
    %2781 = vmatpush.msra.mxu0 %v2780
    %v2782 = vand.u32 %v173, 4294901760
    %2783 = vmatpush.msra.mxu0 %v2782
    %v2784 = vand.u32 %v172, 4294901760
    %2785 = vmatpush.msra.mxu0 %v2784
    %v2786 = vand.u32 %v171, 4294901760
    %2787 = vmatpush.msra.mxu0 %v2786
    %v2788 = vand.u32 %v170, 4294901760
    %2789 = vmatpush.msra.mxu0 %v2788
    %v2790 = vand.u32 %v169, 4294901760
    %2791 = vmatpush.msra.mxu0 %v2790
    %v2792 = vand.u32 %v168, 4294901760
    %2793 = vmatpush.msra.mxu0 %v2792
    %v2794 = vand.u32 %v167, 4294901760
    %2795 = vmatpush.msra.mxu0 %v2794
    %v2796 = vand.u32 %v166, 4294901760
    %2797 = vmatpush.msra.mxu0 %v2796
    %v2798 = vand.u32 %v165, 4294901760
    %2799 = vmatpush.msra.mxu0 %v2798
    %v2800 = vand.u32 %v52, 4294901760
    %v2801 = vsub.f32 %v52, %v2800
    %v2802 = vand.u32 %v2801, 4294901760
    %2803 = vmatmul.f32.gmra.mxu0 %v2802
    %v2804 = vpop.f32.mrf.mxu0
    %v2805 = vadd.f32 %v2766, %v2804
    %2806 = vdwg.mxu0
    %v2807 = vand.u32 %v180, 4294901760
    %v2808 = vsub.f32 %v180, %v2807
    %v2809 = vand.u32 %v2808, 4294901760
    %2810 = vmatpush.msra.mxu0 %v2809
    %v2811 = vand.u32 %v179, 4294901760
    %v2812 = vsub.f32 %v179, %v2811
    %v2813 = vand.u32 %v2812, 4294901760
    %2814 = vmatpush.msra.mxu0 %v2813
    %v2815 = vand.u32 %v178, 4294901760
    %v2816 = vsub.f32 %v178, %v2815
    %v2817 = vand.u32 %v2816, 4294901760
    %2818 = vmatpush.msra.mxu0 %v2817
    %v2819 = vand.u32 %v177, 4294901760
    %v2820 = vsub.f32 %v177, %v2819
    %v2821 = vand.u32 %v2820, 4294901760
    %2822 = vmatpush.msra.mxu0 %v2821
    %v2823 = vand.u32 %v176, 4294901760
    %v2824 = vsub.f32 %v176, %v2823
    %v2825 = vand.u32 %v2824, 4294901760
    %2826 = vmatpush.msra.mxu0 %v2825
    %v2827 = vand.u32 %v175, 4294901760
    %v2828 = vsub.f32 %v175, %v2827
    %v2829 = vand.u32 %v2828, 4294901760
    %2830 = vmatpush.msra.mxu0 %v2829
    %v2831 = vand.u32 %v174, 4294901760
    %v2832 = vsub.f32 %v174, %v2831
    %v2833 = vand.u32 %v2832, 4294901760
    %2834 = vmatpush.msra.mxu0 %v2833
    %v2835 = vand.u32 %v173, 4294901760
    %v2836 = vsub.f32 %v173, %v2835
    %v2837 = vand.u32 %v2836, 4294901760
    %2838 = vmatpush.msra.mxu0 %v2837
    %v2839 = vand.u32 %v172, 4294901760
    %v2840 = vsub.f32 %v172, %v2839
    %v2841 = vand.u32 %v2840, 4294901760
    %2842 = vmatpush.msra.mxu0 %v2841
    %v2843 = vand.u32 %v171, 4294901760
    %v2844 = vsub.f32 %v171, %v2843
    %v2845 = vand.u32 %v2844, 4294901760
    %2846 = vmatpush.msra.mxu0 %v2845
    %v2847 = vand.u32 %v170, 4294901760
    %v2848 = vsub.f32 %v170, %v2847
    %v2849 = vand.u32 %v2848, 4294901760
    %2850 = vmatpush.msra.mxu0 %v2849
    %v2851 = vand.u32 %v169, 4294901760
    %v2852 = vsub.f32 %v169, %v2851
    %v2853 = vand.u32 %v2852, 4294901760
    %2854 = vmatpush.msra.mxu0 %v2853
    %v2855 = vand.u32 %v168, 4294901760
    %v2856 = vsub.f32 %v168, %v2855
    %v2857 = vand.u32 %v2856, 4294901760
    %2858 = vmatpush.msra.mxu0 %v2857
    %v2859 = vand.u32 %v167, 4294901760
    %v2860 = vsub.f32 %v167, %v2859
    %v2861 = vand.u32 %v2860, 4294901760
    %2862 = vmatpush.msra.mxu0 %v2861
    %v2863 = vand.u32 %v166, 4294901760
    %v2864 = vsub.f32 %v166, %v2863
    %v2865 = vand.u32 %v2864, 4294901760
    %2866 = vmatpush.msra.mxu0 %v2865
    %v2867 = vand.u32 %v165, 4294901760
    %v2868 = vsub.f32 %v165, %v2867
    %v2869 = vand.u32 %v2868, 4294901760
    %2870 = vmatpush.msra.mxu0 %v2869
    %v2871 = vand.u32 %v52, 4294901760
    %2872 = vmatmul.f32.gmra.mxu0 %v2871
    %v2873 = vpop.f32.mrf.mxu0
    %v2874 = vadd.f32 %v2805, %v2873
    %2875 = vdwg.mxu0
    %v2876 = vand.u32 %v180, 4294901760
    %2877 = vmatpush.msra.mxu0 %v2876
    %v2878 = vand.u32 %v179, 4294901760
    %2879 = vmatpush.msra.mxu0 %v2878
    %v2880 = vand.u32 %v178, 4294901760
    %2881 = vmatpush.msra.mxu0 %v2880
    %v2882 = vand.u32 %v177, 4294901760
    %2883 = vmatpush.msra.mxu0 %v2882
    %v2884 = vand.u32 %v176, 4294901760
    %2885 = vmatpush.msra.mxu0 %v2884
    %v2886 = vand.u32 %v175, 4294901760
    %2887 = vmatpush.msra.mxu0 %v2886
    %v2888 = vand.u32 %v174, 4294901760
    %2889 = vmatpush.msra.mxu0 %v2888
    %v2890 = vand.u32 %v173, 4294901760
    %2891 = vmatpush.msra.mxu0 %v2890
    %v2892 = vand.u32 %v172, 4294901760
    %2893 = vmatpush.msra.mxu0 %v2892
    %v2894 = vand.u32 %v171, 4294901760
    %2895 = vmatpush.msra.mxu0 %v2894
    %v2896 = vand.u32 %v170, 4294901760
    %2897 = vmatpush.msra.mxu0 %v2896
    %v2898 = vand.u32 %v169, 4294901760
    %2899 = vmatpush.msra.mxu0 %v2898
    %v2900 = vand.u32 %v168, 4294901760
    %2901 = vmatpush.msra.mxu0 %v2900
    %v2902 = vand.u32 %v167, 4294901760
    %2903 = vmatpush.msra.mxu0 %v2902
    %v2904 = vand.u32 %v166, 4294901760
    %2905 = vmatpush.msra.mxu0 %v2904
    %v2906 = vand.u32 %v165, 4294901760
    %2907 = vmatpush.msra.mxu0 %v2906
    %v2908 = vand.u32 %v52, 4294901760
    %2909 = vmatmul.f32.gmra.mxu0 %v2908
    %v2910 = vpop.f32.mrf.mxu0
    %v2911 = vadd.f32 %v2874, %v2910
    %2912 = vdwg.mxu0
    %2913 = vst [vmem:[#allocation7] sm:$0xff] %v2911
    // Predicated region
    $region22: #{tpu_custom_call.1} parent=1 // pred_check
      _
    $region23: #{tpu_custom_call.1} parent=1 // pred_check_branch
      %2915 = sbr.rel (0) target = $region25
    $region24: #{tpu_custom_call.1} parent=1 // pred_region
      %2917 = vsyncadd [#allocation4], 0
      %s2919 = sshll.u32 [#allocation7], 4
      %s2920 = int_to_ptr.vmem [resolvable:$true] %s2919
      %s2921 = sshll.u32 %s3, 4
      %s2922 = int_to_ptr.hbm [resolvable:$true] %s2921
      %2924 = dma.vmem_to_hbm [thread:$0]  %s2920, 128, %s2922, [#allocation4]
    $region25: #{tpu_custom_call.1} parent=1 // pred_fallthru
      _
    // Predicated region
    $region26: #{tpu_custom_call.1} parent=1 // pred_check
      _
    $region27: #{tpu_custom_call.1} parent=1 // pred_check_branch
      %2926 = sbr.rel (0) target = $region29
    $region28: #{tpu_custom_call.1} parent=1 // pred_region
      %2928 = dma.done [#allocation4], 128
    $region29: #{tpu_custom_call.1} parent=1 // pred_fallthru
      _
    %2929 = vsyncpa [#allocation3], 1
    %2930 = vsyncpa [#allocation6], 1
    %2931 = vsyncpa [#allocation4], 1

</llo_original>
